<compile_context>
chip_gen: v6e
topology: v6e:2x2x1
jax: 0.10.0
libtpu: 0.0.40
codegen_flags: <defaults>
</compile_context>

<pallas_src>
import functools

import jax
import jax.numpy as jnp
from jax import lax
from jax.experimental import pallas as pl
from jax.experimental.pallas import tpu as pltpu

_BN_EPS = 1e-5
_TAPS = tuple((di, dj) for di in (-1, 0, 1) for dj in (-1, 0, 1))


def _shuffle_xception_kernel(x_ref, mask_ref, tapmask_ref,
                             wdw1_ref, wpw1_ref,
                             wdw2_ref, wpw2_ref,
                             wdw3_ref, wpw3_ref,
                             out_ref, *, width):
  """branch_main of ShuffleXceptionCS in (C, B*H*W) layout.

  x_ref:       (inc,  N)      activations, N = B*H*W on the lane axis
  mask_ref:    (midc, 1)      ChannelSelector mask (remaining post-BN selectors)
  tapmask_ref: (9,    N)      zero-padding validity mask per 3x3 tap
  wdw*_ref:    (9, C, 1)      depthwise 3x3 weights, row t = (di+1)*3 + (dj+1)
  wpw*_ref:    (Cin, Cout, 1) 1x1 conv weights (adjacent ChannelSelectors pre-folded)
  out_ref:     (ouc, N)
  """
  n = x_ref.shape[1]
  inv_n = 1.0 / n

  mask = mask_ref[...]                                    # (midc, 1)
  tm = tapmask_ref[...]                                   # (9, N), loaded once
  tmask = [tm[t:t + 1, :] for t in range(9)]              # hoisted (1, N) border masks

  def dwconv(x, w_ref):
    # Depthwise 3x3, stride 1, zero pad 1, on the flattened (b, h, w) lane axis.
    w = w_ref[...]                                        # (9, C, 1), loaded once
    acc = x * w[4]                                        # center tap: no shift, no mask
    for t, (di, dj) in enumerate(_TAPS):
      if di == 0 and dj == 0:
        continue
      off = di * width + dj
      shift = (-off) % n                                  # shifted[p] = x[p + off]
      shifted = pltpu.roll(x, shift, axis=1)              # XLU lane rotate
      acc = acc + (shifted * tmask[t]) * w[t]
    return acc

  def bn(x):
    # BatchNorm2d(affine=False), training-mode batch statistics, single pass (f32).
    s = jnp.sum(x, axis=1, keepdims=True)                 # (C, 1)
    ss = jnp.sum(x * x, axis=1, keepdims=True)            # (C, 1)
    mean = s * inv_n
    var = ss * inv_n - mean * mean
    return (x - mean) * lax.rsqrt(var + _BN_EPS)

  def pw(x, w_ref):
    # 1x1 conv as Cin broadcast-MACs on the VPU (too small to feed the MXU usefully).
    w = w_ref[...]                                        # (Cin, Cout, 1), loaded once
    acc = x[0:1, :] * w[0]                                # (Cout, N)
    for c in range(1, w.shape[0]):
      acc = acc + x[c:c + 1, :] * w[c]
    return acc

  x = x_ref[...].astype(jnp.float32)

  # [0] dwconv3x3(inc)   [1] BN
  x = bn(dwconv(x, wdw1_ref))
  # [2] conv1x1 inc->midc  ([3] CS folded into wpw1 cols)  [4] BN  [5] CS  [6] ReLU
  x = jnp.maximum(bn(pw(x, wpw1_ref)) * mask, 0.0)
  # [7] dwconv3x3(midc)  [8] BN   ([9] CS folded into wpw2 rows)
  x = bn(dwconv(x, wdw2_ref))
  # [10] conv1x1 midc->midc ([11] CS folded into wpw2 cols) [12] BN [13] CS [14] ReLU
  x = jnp.maximum(bn(pw(x, wpw2_ref)) * mask, 0.0)
  # [15] dwconv3x3(midc) [16] BN  ([17] CS folded into wpw3 rows)
  x = bn(dwconv(x, wdw3_ref))
  # [18] conv1x1 midc->ouc  [19] BN  [20] ReLU
  x = jnp.maximum(bn(pw(x, wpw3_ref)), 0.0)

  out_ref[...] = x.astype(out_ref.dtype)


def _branch_main_pallas(x_2d, mask_2d, tapmask, params_k, *, width):
  _, n = x_2d.shape
  ouc = params_k[-1].shape[1]
  vmem = pl.BlockSpec(memory_space=pltpu.MemorySpace.VMEM)
  # The whole problem (a few tens of KiB) lives in VMEM in a single invocation:
  # training-mode BatchNorm couples every (batch, h, w) position, so a clean grid split
  # would need a 2-pass BN per stage.
  # TODO(synk): for much larger shapes, tile the spatial axis with a 2-pass BN
  # (stat accumulation then normalize) and mark that grid axis "parallel" for v7x's 2 TCs.
  return pl.pallas_call(
      functools.partial(_shuffle_xception_kernel, width=width),
      out_shape=jax.ShapeDtypeStruct((ouc, n), jnp.float32),
      in_specs=[vmem] * 9,
      out_specs=vmem,
  )(x_2d, mask_2d, tapmask, *params_k)


def shuffle_xception_cs_forward(old_x_nchw, channel_mask, params, *, midc):
  """Forward pass of ShuffleXceptionCS with stride=1, activation='relu'.

  old_x_nchw: (B, inp, H, W) float32 (NCHW, PyTorch convention)
  channel_mask: 1-D float vector, length >= midc
  params: (wdw1(9,inc), wpw1(inc,midc), wdw2(9,midc), wpw2(midc,midc),
           wdw3(9,midc), wpw3(midc,ouc))
  """
  wdw1, wpw1, wdw2, wpw2, wdw3, wpw3 = params
  B, inp, H, W = old_x_nchw.shape
  HW = H * W
  N = B * HW
  inc = inp // 2
  ouc = wpw3.shape[1]

  # channel_shuffle: even channels -> proj branch, odd channels -> main branch.
  x_proj = old_x_nchw[:, 0::2]
  x_main = old_x_nchw[:, 1::2]

  # NCHW -> lane-dense (C, B*H*W): channels on sublanes, flattened spatial on lanes.
  x_2d = jnp.transpose(x_main.reshape(B, inc, HW), (1, 0, 2)).reshape(inc, N)

  m = channel_mask[:midc].astype(jnp.float32)
  mask_2d = m[:, None]                                          # (midc, 1)

  # Fold the ChannelSelector masks adjacent to the 1x1 convs into the (tiny) weights.
  # Exactly equivalent: pw(x)*mask == pw with mask-scaled columns;
  #                     pw(x*mask) == pw with mask-scaled rows.
  wpw1_eff = (wpw1 * m[None, :])[:, :, None]                    # CS[3]  (columns)
  wpw2_eff = (m[:, None] * wpw2 * m[None, :])[:, :, None]       # CS[9] rows, CS[11] cols
  wpw3_eff = (m[:, None] * wpw3)[:, :, None]                    # CS[17] (rows)
  wdw1_k = wdw1[:, :, None]
  wdw2_k = wdw2[:, :, None]
  wdw3_k = wdw3[:, :, None]

  # Per-tap zero-padding validity masks over the flattened (b, h, w) lane axis, built once
  # outside the kernel (avoids in-kernel integer div/mod), tiled over batch.
  hh = jnp.arange(H)[:, None]
  ww = jnp.arange(W)[None, :]
  rows = []
  for di in (-1, 0, 1):
    for dj in (-1, 0, 1):
      valid = ((hh + di >= 0) & (hh + di < H) &
               (ww + dj >= 0) & (ww + dj < W))
      rows.append(jnp.tile(valid.reshape(1, HW), (1, B)))
  tapmask = jnp.concatenate(rows, axis=0).astype(jnp.float32)   # (9, B*H*W)

  out_2d = _branch_main_pallas(
      x_2d, mask_2d, tapmask,
      (wdw1_k, wpw1_eff, wdw2_k, wpw2_eff, wdw3_k, wpw3_eff),
      width=W)

  out_nchw = jnp.transpose(out_2d.reshape(ouc, B, HW), (1, 0, 2)).reshape(B, ouc, H, W)
  return jnp.concatenate([x_proj, out_nchw], axis=1)


# ----------------------- pure-JAX reference (for checking) -----------------------
def _reference_forward(old_x_nchw, channel_mask, params, *, midc):
  wdw1, wpw1, wdw2, wpw2, wdw3, wpw3 = params
  x_proj = old_x_nchw[:, 0::2]
  x = jnp.transpose(old_x_nchw[:, 1::2], (0, 2, 3, 1))  # NHWC
  mask = channel_mask[:midc].astype(jnp.float32)

  def dw(x, w9):
    C = x.shape[-1]
    k = w9.reshape(3, 3, C)[:, :, None, :]  # HWIO with I=1
    return lax.conv_general_dilated(
        x, k, window_strides=(1, 1), padding=((1, 1), (1, 1)),
        dimension_numbers=('NHWC', 'HWIO', 'NHWC'), feature_group_count=C)

  def bn(x):
    m = jnp.mean(x, axis=(0, 1, 2))
    v = jnp.mean(jnp.square(x - m), axis=(0, 1, 2))
    return (x - m) / jnp.sqrt(v + _BN_EPS)

  def pw(x, w):
    return jnp.einsum('bhwc,cd->bhwd', x, w)

  x = bn(dw(x, wdw1))
  x = pw(x, wpw1) * mask
  x = jnp.maximum(bn(x) * mask, 0.0)
  x = bn(dw(x, wdw2)) * mask
  x = pw(x, wpw2) * mask
  x = jnp.maximum(bn(x) * mask, 0.0)
  x = bn(dw(x, wdw3)) * mask
  x = jnp.maximum(bn(pw(x, wpw3)), 0.0)

  out = jnp.transpose(x, (0, 3, 1, 2))
  return jnp.concatenate([x_proj, out], axis=1)


if __name__ == "__main__":
  # Module config: ShuffleXceptionCS(inp=8, oup=16, base_mid_channels=8, stride=1, 'relu')
  B, inp, H, W = 2, 8, 16, 16
  oup, base_mid = 16, 8
  inc = inp // 2          # 4
  midc = base_mid         # 8
  projc = inp // 2        # 4
  ouc = oup - projc       # 12

  key = jax.random.PRNGKey(0)
  ks = jax.random.split(key, 8)

  old_x = jax.random.normal(ks[0], (B, inp, H, W), jnp.float32)
  # channel_mask of length 16; ChannelSelector uses the first midc entries.
  channel_mask = (jnp.arange(16) < 6).astype(jnp.float32)

  params = (
      (jax.random.normal(ks[1], (9, inc), jnp.float32) * 0.2),      # dwconv1 weights
      (jax.random.normal(ks[2], (inc, midc), jnp.float32) * 0.2),   # 1x1 conv inc->midc
      (jax.random.normal(ks[3], (9, midc), jnp.float32) * 0.2),     # dwconv2 weights
      (jax.random.normal(ks[4], (midc, midc), jnp.float32) * 0.2),  # 1x1 conv midc->midc
      (jax.random.normal(ks[5], (9, midc), jnp.float32) * 0.2),     # dwconv3 weights
      (jax.random.normal(ks[6], (midc, ouc), jnp.float32) * 0.2),   # 1x1 conv midc->ouc
  )

  out = shuffle_xception_cs_forward(old_x, channel_mask, params, midc=midc)
  out = jax.block_until_ready(out)
  assert out.shape == (B, oup, H, W), out.shape

  ref = _reference_forward(old_x, channel_mask, params, midc=midc)
  ref = jax.block_until_ready(ref)
  err = float(jnp.max(jnp.abs(out - ref)))
  assert err < 1e-3, f"max abs error vs reference: {err}"

  print("KERNEL_OK")
</pallas_src>

<mosaic_0001>
module attributes {stable_mosaic.version = 11 : i64} {
  func.func @_shuffle_xception_kernel(%arg0: memref<4x512xf32, #tpu.memory_space<vmem>>, %arg1: memref<8x1xf32, #tpu.memory_space<vmem>>, %arg2: memref<9x512xf32, #tpu.memory_space<vmem>>, %arg3: memref<9x4x1xf32, #tpu.memory_space<vmem>>, %arg4: memref<4x8x1xf32, #tpu.memory_space<vmem>>, %arg5: memref<9x8x1xf32, #tpu.memory_space<vmem>>, %arg6: memref<8x8x1xf32, #tpu.memory_space<vmem>>, %arg7: memref<9x8x1xf32, #tpu.memory_space<vmem>>, %arg8: memref<8x12x1xf32, #tpu.memory_space<vmem>>, %arg9: memref<12x512xf32, #tpu.memory_space<vmem>>) attributes {dimension_semantics = [], scalar_prefetch = 0 : i64, scratch_operands = 0 : i64, tpu.core_type = #tpu.core_type<tc>} {
    %c0 = arith.constant 0 : index
    %c0_0 = arith.constant 0 : index
    %0 = vector.load %arg1[%c0, %c0_0] : memref<8x1xf32, #tpu.memory_space<vmem>>, vector<8x1xf32>
    %c0_1 = arith.constant 0 : index
    %c0_2 = arith.constant 0 : index
    %1 = vector.load %arg2[%c0_1, %c0_2] : memref<9x512xf32, #tpu.memory_space<vmem>>, vector<9x512xf32>
    %2 = vector.extract_strided_slice %1 {offsets = [0, 0], sizes = [1, 512], strides = [1, 1]} : vector<9x512xf32> to vector<1x512xf32>
    %3 = vector.extract_strided_slice %1 {offsets = [1, 0], sizes = [1, 512], strides = [1, 1]} : vector<9x512xf32> to vector<1x512xf32>
    %4 = vector.extract_strided_slice %1 {offsets = [2, 0], sizes = [1, 512], strides = [1, 1]} : vector<9x512xf32> to vector<1x512xf32>
    %5 = vector.extract_strided_slice %1 {offsets = [3, 0], sizes = [1, 512], strides = [1, 1]} : vector<9x512xf32> to vector<1x512xf32>
    %6 = vector.extract_strided_slice %1 {offsets = [5, 0], sizes = [1, 512], strides = [1, 1]} : vector<9x512xf32> to vector<1x512xf32>
    %7 = vector.extract_strided_slice %1 {offsets = [6, 0], sizes = [1, 512], strides = [1, 1]} : vector<9x512xf32> to vector<1x512xf32>
    %8 = vector.extract_strided_slice %1 {offsets = [7, 0], sizes = [1, 512], strides = [1, 1]} : vector<9x512xf32> to vector<1x512xf32>
    %9 = vector.extract_strided_slice %1 {offsets = [8, 0], sizes = [1, 512], strides = [1, 1]} : vector<9x512xf32> to vector<1x512xf32>
    %c0_3 = arith.constant 0 : index
    %c0_4 = arith.constant 0 : index
    %10 = vector.load %arg0[%c0_3, %c0_4] : memref<4x512xf32, #tpu.memory_space<vmem>>, vector<4x512xf32>
    %c0_5 = arith.constant 0 : index
    %c0_6 = arith.constant 0 : index
    %c0_7 = arith.constant 0 : index
    %11 = vector.load %arg3[%c0_5, %c0_6, %c0_7] : memref<9x4x1xf32, #tpu.memory_space<vmem>>, vector<9x4x1xf32>
    %12 = vector.extract_strided_slice %11 {offsets = [4, 0, 0], sizes = [1, 4, 1], strides = [1, 1, 1]} : vector<9x4x1xf32> to vector<1x4x1xf32>
    %13 = vector.shape_cast %12 : vector<1x4x1xf32> to vector<4x1xf32>
    %14 = vector.broadcast %13 : vector<4x1xf32> to vector<4x512xf32>
    %15 = arith.mulf %10, %14 : vector<4x512xf32>
    %c17_i32 = arith.constant 17 : i32
    %16 = tpu.dynamic_rotate %10 by %c17_i32 dim 1 : vector<4x512xf32>, i32 -> vector<4x512xf32>
    %17 = vector.broadcast %2 : vector<1x512xf32> to vector<4x512xf32>
    %18 = arith.mulf %16, %17 : vector<4x512xf32>
    %19 = vector.extract_strided_slice %11 {offsets = [0, 0, 0], sizes = [1, 4, 1], strides = [1, 1, 1]} : vector<9x4x1xf32> to vector<1x4x1xf32>
    %20 = vector.shape_cast %19 : vector<1x4x1xf32> to vector<4x1xf32>
    %21 = vector.broadcast %20 : vector<4x1xf32> to vector<4x512xf32>
    %22 = arith.mulf %18, %21 : vector<4x512xf32>
    %23 = arith.addf %15, %22 : vector<4x512xf32>
    %c16_i32 = arith.constant 16 : i32
    %24 = tpu.dynamic_rotate %10 by %c16_i32 dim 1 : vector<4x512xf32>, i32 -> vector<4x512xf32>
    %25 = vector.broadcast %3 : vector<1x512xf32> to vector<4x512xf32>
    %26 = arith.mulf %24, %25 : vector<4x512xf32>
    %27 = vector.extract_strided_slice %11 {offsets = [1, 0, 0], sizes = [1, 4, 1], strides = [1, 1, 1]} : vector<9x4x1xf32> to vector<1x4x1xf32>
    %28 = vector.shape_cast %27 : vector<1x4x1xf32> to vector<4x1xf32>
    %29 = vector.broadcast %28 : vector<4x1xf32> to vector<4x512xf32>
    %30 = arith.mulf %26, %29 : vector<4x512xf32>
    %31 = arith.addf %23, %30 : vector<4x512xf32>
    %c15_i32 = arith.constant 15 : i32
    %32 = tpu.dynamic_rotate %10 by %c15_i32 dim 1 : vector<4x512xf32>, i32 -> vector<4x512xf32>
    %33 = vector.broadcast %4 : vector<1x512xf32> to vector<4x512xf32>
    %34 = arith.mulf %32, %33 : vector<4x512xf32>
    %35 = vector.extract_strided_slice %11 {offsets = [2, 0, 0], sizes = [1, 4, 1], strides = [1, 1, 1]} : vector<9x4x1xf32> to vector<1x4x1xf32>
    %36 = vector.shape_cast %35 : vector<1x4x1xf32> to vector<4x1xf32>
    %37 = vector.broadcast %36 : vector<4x1xf32> to vector<4x512xf32>
    %38 = arith.mulf %34, %37 : vector<4x512xf32>
    %39 = arith.addf %31, %38 : vector<4x512xf32>
    %c1_i32 = arith.constant 1 : i32
    %40 = tpu.dynamic_rotate %10 by %c1_i32 dim 1 : vector<4x512xf32>, i32 -> vector<4x512xf32>
    %41 = vector.broadcast %5 : vector<1x512xf32> to vector<4x512xf32>
    %42 = arith.mulf %40, %41 : vector<4x512xf32>
    %43 = vector.extract_strided_slice %11 {offsets = [3, 0, 0], sizes = [1, 4, 1], strides = [1, 1, 1]} : vector<9x4x1xf32> to vector<1x4x1xf32>
    %44 = vector.shape_cast %43 : vector<1x4x1xf32> to vector<4x1xf32>
    %45 = vector.broadcast %44 : vector<4x1xf32> to vector<4x512xf32>
    %46 = arith.mulf %42, %45 : vector<4x512xf32>
    %47 = arith.addf %39, %46 : vector<4x512xf32>
    %c511_i32 = arith.constant 511 : i32
    %48 = tpu.dynamic_rotate %10 by %c511_i32 dim 1 : vector<4x512xf32>, i32 -> vector<4x512xf32>
    %49 = vector.broadcast %6 : vector<1x512xf32> to vector<4x512xf32>
    %50 = arith.mulf %48, %49 : vector<4x512xf32>
    %51 = vector.extract_strided_slice %11 {offsets = [5, 0, 0], sizes = [1, 4, 1], strides = [1, 1, 1]} : vector<9x4x1xf32> to vector<1x4x1xf32>
    %52 = vector.shape_cast %51 : vector<1x4x1xf32> to vector<4x1xf32>
    %53 = vector.broadcast %52 : vector<4x1xf32> to vector<4x512xf32>
    %54 = arith.mulf %50, %53 : vector<4x512xf32>
    %55 = arith.addf %47, %54 : vector<4x512xf32>
    %c497_i32 = arith.constant 497 : i32
    %56 = tpu.dynamic_rotate %10 by %c497_i32 dim 1 : vector<4x512xf32>, i32 -> vector<4x512xf32>
    %57 = vector.broadcast %7 : vector<1x512xf32> to vector<4x512xf32>
    %58 = arith.mulf %56, %57 : vector<4x512xf32>
    %59 = vector.extract_strided_slice %11 {offsets = [6, 0, 0], sizes = [1, 4, 1], strides = [1, 1, 1]} : vector<9x4x1xf32> to vector<1x4x1xf32>
    %60 = vector.shape_cast %59 : vector<1x4x1xf32> to vector<4x1xf32>
    %61 = vector.broadcast %60 : vector<4x1xf32> to vector<4x512xf32>
    %62 = arith.mulf %58, %61 : vector<4x512xf32>
    %63 = arith.addf %55, %62 : vector<4x512xf32>
    %c496_i32 = arith.constant 496 : i32
    %64 = tpu.dynamic_rotate %10 by %c496_i32 dim 1 : vector<4x512xf32>, i32 -> vector<4x512xf32>
    %65 = vector.broadcast %8 : vector<1x512xf32> to vector<4x512xf32>
    %66 = arith.mulf %64, %65 : vector<4x512xf32>
    %67 = vector.extract_strided_slice %11 {offsets = [7, 0, 0], sizes = [1, 4, 1], strides = [1, 1, 1]} : vector<9x4x1xf32> to vector<1x4x1xf32>
    %68 = vector.shape_cast %67 : vector<1x4x1xf32> to vector<4x1xf32>
    %69 = vector.broadcast %68 : vector<4x1xf32> to vector<4x512xf32>
    %70 = arith.mulf %66, %69 : vector<4x512xf32>
    %71 = arith.addf %63, %70 : vector<4x512xf32>
    %c495_i32 = arith.constant 495 : i32
    %72 = tpu.dynamic_rotate %10 by %c495_i32 dim 1 : vector<4x512xf32>, i32 -> vector<4x512xf32>
    %73 = vector.broadcast %9 : vector<1x512xf32> to vector<4x512xf32>
    %74 = arith.mulf %72, %73 : vector<4x512xf32>
    %75 = vector.extract_strided_slice %11 {offsets = [8, 0, 0], sizes = [1, 4, 1], strides = [1, 1, 1]} : vector<9x4x1xf32> to vector<1x4x1xf32>
    %76 = vector.shape_cast %75 : vector<1x4x1xf32> to vector<4x1xf32>
    %77 = vector.broadcast %76 : vector<4x1xf32> to vector<4x512xf32>
    %78 = arith.mulf %74, %77 : vector<4x512xf32>
    %79 = arith.addf %71, %78 : vector<4x512xf32>
    %cst = arith.constant dense<0.000000e+00> : vector<4xf32>
    %80 = vector.multi_reduction <add>, %79, %cst [1] : vector<4x512xf32> to vector<4xf32>
    %81 = vector.shape_cast %80 : vector<4xf32> to vector<4x1xf32>
    %82 = arith.mulf %79, %79 : vector<4x512xf32>
    %cst_8 = arith.constant dense<0.000000e+00> : vector<4xf32>
    %83 = vector.multi_reduction <add>, %82, %cst_8 [1] : vector<4x512xf32> to vector<4xf32>
    %84 = vector.shape_cast %83 : vector<4xf32> to vector<4x1xf32>
    %cst_9 = arith.constant 0.001953125 : f32
    %85 = vector.broadcast %cst_9 : f32 to vector<4x1xf32>
    %86 = arith.mulf %81, %85 : vector<4x1xf32>
    %cst_10 = arith.constant 0.001953125 : f32
    %87 = vector.broadcast %cst_10 : f32 to vector<4x1xf32>
    %88 = arith.mulf %84, %87 : vector<4x1xf32>
    %89 = arith.mulf %86, %86 : vector<4x1xf32>
    %90 = arith.subf %88, %89 : vector<4x1xf32>
    %91 = vector.broadcast %86 : vector<4x1xf32> to vector<4x512xf32>
    %92 = arith.subf %79, %91 : vector<4x512xf32>
    %cst_11 = arith.constant 9.99999974E-6 : f32
    %93 = vector.broadcast %cst_11 : f32 to vector<4x1xf32>
    %94 = arith.addf %90, %93 : vector<4x1xf32>
    %95 = math.rsqrt %94 : vector<4x1xf32>
    %96 = vector.broadcast %95 : vector<4x1xf32> to vector<4x512xf32>
    %97 = arith.mulf %92, %96 : vector<4x512xf32>
    %c0_12 = arith.constant 0 : index
    %c0_13 = arith.constant 0 : index
    %c0_14 = arith.constant 0 : index
    %98 = vector.load %arg4[%c0_12, %c0_13, %c0_14] : memref<4x8x1xf32, #tpu.memory_space<vmem>>, vector<4x8x1xf32>
    %99 = vector.extract_strided_slice %97 {offsets = [0, 0], sizes = [1, 512], strides = [1, 1]} : vector<4x512xf32> to vector<1x512xf32>
    %100 = vector.extract_strided_slice %98 {offsets = [0, 0, 0], sizes = [1, 8, 1], strides = [1, 1, 1]} : vector<4x8x1xf32> to vector<1x8x1xf32>
    %101 = vector.shape_cast %100 : vector<1x8x1xf32> to vector<8x1xf32>
    %102 = vector.broadcast %99 : vector<1x512xf32> to vector<8x512xf32>
    %103 = vector.broadcast %101 : vector<8x1xf32> to vector<8x512xf32>
    %104 = arith.mulf %102, %103 : vector<8x512xf32>
    %105 = vector.extract_strided_slice %97 {offsets = [1, 0], sizes = [1, 512], strides = [1, 1]} : vector<4x512xf32> to vector<1x512xf32>
    %106 = vector.extract_strided_slice %98 {offsets = [1, 0, 0], sizes = [1, 8, 1], strides = [1, 1, 1]} : vector<4x8x1xf32> to vector<1x8x1xf32>
    %107 = vector.shape_cast %106 : vector<1x8x1xf32> to vector<8x1xf32>
    %108 = vector.broadcast %105 : vector<1x512xf32> to vector<8x512xf32>
    %109 = vector.broadcast %107 : vector<8x1xf32> to vector<8x512xf32>
    %110 = arith.mulf %108, %109 : vector<8x512xf32>
    %111 = arith.addf %104, %110 : vector<8x512xf32>
    %112 = vector.extract_strided_slice %97 {offsets = [2, 0], sizes = [1, 512], strides = [1, 1]} : vector<4x512xf32> to vector<1x512xf32>
    %113 = vector.extract_strided_slice %98 {offsets = [2, 0, 0], sizes = [1, 8, 1], strides = [1, 1, 1]} : vector<4x8x1xf32> to vector<1x8x1xf32>
    %114 = vector.shape_cast %113 : vector<1x8x1xf32> to vector<8x1xf32>
    %115 = vector.broadcast %112 : vector<1x512xf32> to vector<8x512xf32>
    %116 = vector.broadcast %114 : vector<8x1xf32> to vector<8x512xf32>
    %117 = arith.mulf %115, %116 : vector<8x512xf32>
    %118 = arith.addf %111, %117 : vector<8x512xf32>
    %119 = vector.extract_strided_slice %97 {offsets = [3, 0], sizes = [1, 512], strides = [1, 1]} : vector<4x512xf32> to vector<1x512xf32>
    %120 = vector.extract_strided_slice %98 {offsets = [3, 0, 0], sizes = [1, 8, 1], strides = [1, 1, 1]} : vector<4x8x1xf32> to vector<1x8x1xf32>
    %121 = vector.shape_cast %120 : vector<1x8x1xf32> to vector<8x1xf32>
    %122 = vector.broadcast %119 : vector<1x512xf32> to vector<8x512xf32>
    %123 = vector.broadcast %121 : vector<8x1xf32> to vector<8x512xf32>
    %124 = arith.mulf %122, %123 : vector<8x512xf32>
    %125 = arith.addf %118, %124 : vector<8x512xf32>
    %cst_15 = arith.constant dense<0.000000e+00> : vector<8xf32>
    %126 = vector.multi_reduction <add>, %125, %cst_15 [1] : vector<8x512xf32> to vector<8xf32>
    %127 = vector.shape_cast %126 : vector<8xf32> to vector<8x1xf32>
    %128 = arith.mulf %125, %125 : vector<8x512xf32>
    %cst_16 = arith.constant dense<0.000000e+00> : vector<8xf32>
    %129 = vector.multi_reduction <add>, %128, %cst_16 [1] : vector<8x512xf32> to vector<8xf32>
    %130 = vector.shape_cast %129 : vector<8xf32> to vector<8x1xf32>
    %cst_17 = arith.constant 0.001953125 : f32
    %131 = vector.broadcast %cst_17 : f32 to vector<8x1xf32>
    %132 = arith.mulf %127, %131 : vector<8x1xf32>
    %cst_18 = arith.constant 0.001953125 : f32
    %133 = vector.broadcast %cst_18 : f32 to vector<8x1xf32>
    %134 = arith.mulf %130, %133 : vector<8x1xf32>
    %135 = arith.mulf %132, %132 : vector<8x1xf32>
    %136 = arith.subf %134, %135 : vector<8x1xf32>
    %137 = vector.broadcast %132 : vector<8x1xf32> to vector<8x512xf32>
    %138 = arith.subf %125, %137 : vector<8x512xf32>
    %cst_19 = arith.constant 9.99999974E-6 : f32
    %139 = vector.broadcast %cst_19 : f32 to vector<8x1xf32>
    %140 = arith.addf %136, %139 : vector<8x1xf32>
    %141 = math.rsqrt %140 : vector<8x1xf32>
    %142 = vector.broadcast %141 : vector<8x1xf32> to vector<8x512xf32>
    %143 = arith.mulf %138, %142 : vector<8x512xf32>
    %144 = vector.broadcast %0 : vector<8x1xf32> to vector<8x512xf32>
    %145 = arith.mulf %143, %144 : vector<8x512xf32>
    %cst_20 = arith.constant 0.000000e+00 : f32
    %146 = vector.broadcast %cst_20 : f32 to vector<8x512xf32>
    %147 = arith.maximumf %145, %146 : vector<8x512xf32>
    %c0_21 = arith.constant 0 : index
    %c0_22 = arith.constant 0 : index
    %c0_23 = arith.constant 0 : index
    %148 = vector.load %arg5[%c0_21, %c0_22, %c0_23] : memref<9x8x1xf32, #tpu.memory_space<vmem>>, vector<9x8x1xf32>
    %149 = vector.extract_strided_slice %148 {offsets = [4, 0, 0], sizes = [1, 8, 1], strides = [1, 1, 1]} : vector<9x8x1xf32> to vector<1x8x1xf32>
    %150 = vector.shape_cast %149 : vector<1x8x1xf32> to vector<8x1xf32>
    %151 = vector.broadcast %150 : vector<8x1xf32> to vector<8x512xf32>
    %152 = arith.mulf %147, %151 : vector<8x512xf32>
    %c17_i32_24 = arith.constant 17 : i32
    %153 = tpu.dynamic_rotate %147 by %c17_i32_24 dim 1 : vector<8x512xf32>, i32 -> vector<8x512xf32>
    %154 = vector.broadcast %2 : vector<1x512xf32> to vector<8x512xf32>
    %155 = arith.mulf %153, %154 : vector<8x512xf32>
    %156 = vector.extract_strided_slice %148 {offsets = [0, 0, 0], sizes = [1, 8, 1], strides = [1, 1, 1]} : vector<9x8x1xf32> to vector<1x8x1xf32>
    %157 = vector.shape_cast %156 : vector<1x8x1xf32> to vector<8x1xf32>
    %158 = vector.broadcast %157 : vector<8x1xf32> to vector<8x512xf32>
    %159 = arith.mulf %155, %158 : vector<8x512xf32>
    %160 = arith.addf %152, %159 : vector<8x512xf32>
    %c16_i32_25 = arith.constant 16 : i32
    %161 = tpu.dynamic_rotate %147 by %c16_i32_25 dim 1 : vector<8x512xf32>, i32 -> vector<8x512xf32>
    %162 = vector.broadcast %3 : vector<1x512xf32> to vector<8x512xf32>
    %163 = arith.mulf %161, %162 : vector<8x512xf32>
    %164 = vector.extract_strided_slice %148 {offsets = [1, 0, 0], sizes = [1, 8, 1], strides = [1, 1, 1]} : vector<9x8x1xf32> to vector<1x8x1xf32>
    %165 = vector.shape_cast %164 : vector<1x8x1xf32> to vector<8x1xf32>
    %166 = vector.broadcast %165 : vector<8x1xf32> to vector<8x512xf32>
    %167 = arith.mulf %163, %166 : vector<8x512xf32>
    %168 = arith.addf %160, %167 : vector<8x512xf32>
    %c15_i32_26 = arith.constant 15 : i32
    %169 = tpu.dynamic_rotate %147 by %c15_i32_26 dim 1 : vector<8x512xf32>, i32 -> vector<8x512xf32>
    %170 = vector.broadcast %4 : vector<1x512xf32> to vector<8x512xf32>
    %171 = arith.mulf %169, %170 : vector<8x512xf32>
    %172 = vector.extract_strided_slice %148 {offsets = [2, 0, 0], sizes = [1, 8, 1], strides = [1, 1, 1]} : vector<9x8x1xf32> to vector<1x8x1xf32>
    %173 = vector.shape_cast %172 : vector<1x8x1xf32> to vector<8x1xf32>
    %174 = vector.broadcast %173 : vector<8x1xf32> to vector<8x512xf32>
    %175 = arith.mulf %171, %174 : vector<8x512xf32>
    %176 = arith.addf %168, %175 : vector<8x512xf32>
    %c1_i32_27 = arith.constant 1 : i32
    %177 = tpu.dynamic_rotate %147 by %c1_i32_27 dim 1 : vector<8x512xf32>, i32 -> vector<8x512xf32>
    %178 = vector.broadcast %5 : vector<1x512xf32> to vector<8x512xf32>
    %179 = arith.mulf %177, %178 : vector<8x512xf32>
    %180 = vector.extract_strided_slice %148 {offsets = [3, 0, 0], sizes = [1, 8, 1], strides = [1, 1, 1]} : vector<9x8x1xf32> to vector<1x8x1xf32>
    %181 = vector.shape_cast %180 : vector<1x8x1xf32> to vector<8x1xf32>
    %182 = vector.broadcast %181 : vector<8x1xf32> to vector<8x512xf32>
    %183 = arith.mulf %179, %182 : vector<8x512xf32>
    %184 = arith.addf %176, %183 : vector<8x512xf32>
    %c511_i32_28 = arith.constant 511 : i32
    %185 = tpu.dynamic_rotate %147 by %c511_i32_28 dim 1 : vector<8x512xf32>, i32 -> vector<8x512xf32>
    %186 = vector.broadcast %6 : vector<1x512xf32> to vector<8x512xf32>
    %187 = arith.mulf %185, %186 : vector<8x512xf32>
    %188 = vector.extract_strided_slice %148 {offsets = [5, 0, 0], sizes = [1, 8, 1], strides = [1, 1, 1]} : vector<9x8x1xf32> to vector<1x8x1xf32>
    %189 = vector.shape_cast %188 : vector<1x8x1xf32> to vector<8x1xf32>
    %190 = vector.broadcast %189 : vector<8x1xf32> to vector<8x512xf32>
    %191 = arith.mulf %187, %190 : vector<8x512xf32>
    %192 = arith.addf %184, %191 : vector<8x512xf32>
    %c497_i32_29 = arith.constant 497 : i32
    %193 = tpu.dynamic_rotate %147 by %c497_i32_29 dim 1 : vector<8x512xf32>, i32 -> vector<8x512xf32>
    %194 = vector.broadcast %7 : vector<1x512xf32> to vector<8x512xf32>
    %195 = arith.mulf %193, %194 : vector<8x512xf32>
    %196 = vector.extract_strided_slice %148 {offsets = [6, 0, 0], sizes = [1, 8, 1], strides = [1, 1, 1]} : vector<9x8x1xf32> to vector<1x8x1xf32>
    %197 = vector.shape_cast %196 : vector<1x8x1xf32> to vector<8x1xf32>
    %198 = vector.broadcast %197 : vector<8x1xf32> to vector<8x512xf32>
    %199 = arith.mulf %195, %198 : vector<8x512xf32>
    %200 = arith.addf %192, %199 : vector<8x512xf32>
    %c496_i32_30 = arith.constant 496 : i32
    %201 = tpu.dynamic_rotate %147 by %c496_i32_30 dim 1 : vector<8x512xf32>, i32 -> vector<8x512xf32>
    %202 = vector.broadcast %8 : vector<1x512xf32> to vector<8x512xf32>
    %203 = arith.mulf %201, %202 : vector<8x512xf32>
    %204 = vector.extract_strided_slice %148 {offsets = [7, 0, 0], sizes = [1, 8, 1], strides = [1, 1, 1]} : vector<9x8x1xf32> to vector<1x8x1xf32>
    %205 = vector.shape_cast %204 : vector<1x8x1xf32> to vector<8x1xf32>
    %206 = vector.broadcast %205 : vector<8x1xf32> to vector<8x512xf32>
    %207 = arith.mulf %203, %206 : vector<8x512xf32>
    %208 = arith.addf %200, %207 : vector<8x512xf32>
    %c495_i32_31 = arith.constant 495 : i32
    %209 = tpu.dynamic_rotate %147 by %c495_i32_31 dim 1 : vector<8x512xf32>, i32 -> vector<8x512xf32>
    %210 = vector.broadcast %9 : vector<1x512xf32> to vector<8x512xf32>
    %211 = arith.mulf %209, %210 : vector<8x512xf32>
    %212 = vector.extract_strided_slice %148 {offsets = [8, 0, 0], sizes = [1, 8, 1], strides = [1, 1, 1]} : vector<9x8x1xf32> to vector<1x8x1xf32>
    %213 = vector.shape_cast %212 : vector<1x8x1xf32> to vector<8x1xf32>
    %214 = vector.broadcast %213 : vector<8x1xf32> to vector<8x512xf32>
    %215 = arith.mulf %211, %214 : vector<8x512xf32>
    %216 = arith.addf %208, %215 : vector<8x512xf32>
    %cst_32 = arith.constant dense<0.000000e+00> : vector<8xf32>
    %217 = vector.multi_reduction <add>, %216, %cst_32 [1] : vector<8x512xf32> to vector<8xf32>
    %218 = vector.shape_cast %217 : vector<8xf32> to vector<8x1xf32>
    %219 = arith.mulf %216, %216 : vector<8x512xf32>
    %cst_33 = arith.constant dense<0.000000e+00> : vector<8xf32>
    %220 = vector.multi_reduction <add>, %219, %cst_33 [1] : vector<8x512xf32> to vector<8xf32>
    %221 = vector.shape_cast %220 : vector<8xf32> to vector<8x1xf32>
    %cst_34 = arith.constant 0.001953125 : f32
    %222 = vector.broadcast %cst_34 : f32 to vector<8x1xf32>
    %223 = arith.mulf %218, %222 : vector<8x1xf32>
    %cst_35 = arith.constant 0.001953125 : f32
    %224 = vector.broadcast %cst_35 : f32 to vector<8x1xf32>
    %225 = arith.mulf %221, %224 : vector<8x1xf32>
    %226 = arith.mulf %223, %223 : vector<8x1xf32>
    %227 = arith.subf %225, %226 : vector<8x1xf32>
    %228 = vector.broadcast %223 : vector<8x1xf32> to vector<8x512xf32>
    %229 = arith.subf %216, %228 : vector<8x512xf32>
    %cst_36 = arith.constant 9.99999974E-6 : f32
    %230 = vector.broadcast %cst_36 : f32 to vector<8x1xf32>
    %231 = arith.addf %227, %230 : vector<8x1xf32>
    %232 = math.rsqrt %231 : vector<8x1xf32>
    %233 = vector.broadcast %232 : vector<8x1xf32> to vector<8x512xf32>
    %234 = arith.mulf %229, %233 : vector<8x512xf32>
    %c0_37 = arith.constant 0 : index
    %c0_38 = arith.constant 0 : index
    %c0_39 = arith.constant 0 : index
    %235 = vector.load %arg6[%c0_37, %c0_38, %c0_39] : memref<8x8x1xf32, #tpu.memory_space<vmem>>, vector<8x8x1xf32>
    %236 = vector.extract_strided_slice %234 {offsets = [0, 0], sizes = [1, 512], strides = [1, 1]} : vector<8x512xf32> to vector<1x512xf32>
    %237 = vector.extract_strided_slice %235 {offsets = [0, 0, 0], sizes = [1, 8, 1], strides = [1, 1, 1]} : vector<8x8x1xf32> to vector<1x8x1xf32>
    %238 = vector.shape_cast %237 : vector<1x8x1xf32> to vector<8x1xf32>
    %239 = vector.broadcast %236 : vector<1x512xf32> to vector<8x512xf32>
    %240 = vector.broadcast %238 : vector<8x1xf32> to vector<8x512xf32>
    %241 = arith.mulf %239, %240 : vector<8x512xf32>
    %242 = vector.extract_strided_slice %234 {offsets = [1, 0], sizes = [1, 512], strides = [1, 1]} : vector<8x512xf32> to vector<1x512xf32>
    %243 = vector.extract_strided_slice %235 {offsets = [1, 0, 0], sizes = [1, 8, 1], strides = [1, 1, 1]} : vector<8x8x1xf32> to vector<1x8x1xf32>
    %244 = vector.shape_cast %243 : vector<1x8x1xf32> to vector<8x1xf32>
    %245 = vector.broadcast %242 : vector<1x512xf32> to vector<8x512xf32>
    %246 = vector.broadcast %244 : vector<8x1xf32> to vector<8x512xf32>
    %247 = arith.mulf %245, %246 : vector<8x512xf32>
    %248 = arith.addf %241, %247 : vector<8x512xf32>
    %249 = vector.extract_strided_slice %234 {offsets = [2, 0], sizes = [1, 512], strides = [1, 1]} : vector<8x512xf32> to vector<1x512xf32>
    %250 = vector.extract_strided_slice %235 {offsets = [2, 0, 0], sizes = [1, 8, 1], strides = [1, 1, 1]} : vector<8x8x1xf32> to vector<1x8x1xf32>
    %251 = vector.shape_cast %250 : vector<1x8x1xf32> to vector<8x1xf32>
    %252 = vector.broadcast %249 : vector<1x512xf32> to vector<8x512xf32>
    %253 = vector.broadcast %251 : vector<8x1xf32> to vector<8x512xf32>
    %254 = arith.mulf %252, %253 : vector<8x512xf32>
    %255 = arith.addf %248, %254 : vector<8x512xf32>
    %256 = vector.extract_strided_slice %234 {offsets = [3, 0], sizes = [1, 512], strides = [1, 1]} : vector<8x512xf32> to vector<1x512xf32>
    %257 = vector.extract_strided_slice %235 {offsets = [3, 0, 0], sizes = [1, 8, 1], strides = [1, 1, 1]} : vector<8x8x1xf32> to vector<1x8x1xf32>
    %258 = vector.shape_cast %257 : vector<1x8x1xf32> to vector<8x1xf32>
    %259 = vector.broadcast %256 : vector<1x512xf32> to vector<8x512xf32>
    %260 = vector.broadcast %258 : vector<8x1xf32> to vector<8x512xf32>
    %261 = arith.mulf %259, %260 : vector<8x512xf32>
    %262 = arith.addf %255, %261 : vector<8x512xf32>
    %263 = vector.extract_strided_slice %234 {offsets = [4, 0], sizes = [1, 512], strides = [1, 1]} : vector<8x512xf32> to vector<1x512xf32>
    %264 = vector.extract_strided_slice %235 {offsets = [4, 0, 0], sizes = [1, 8, 1], strides = [1, 1, 1]} : vector<8x8x1xf32> to vector<1x8x1xf32>
    %265 = vector.shape_cast %264 : vector<1x8x1xf32> to vector<8x1xf32>
    %266 = vector.broadcast %263 : vector<1x512xf32> to vector<8x512xf32>
    %267 = vector.broadcast %265 : vector<8x1xf32> to vector<8x512xf32>
    %268 = arith.mulf %266, %267 : vector<8x512xf32>
    %269 = arith.addf %262, %268 : vector<8x512xf32>
    %270 = vector.extract_strided_slice %234 {offsets = [5, 0], sizes = [1, 512], strides = [1, 1]} : vector<8x512xf32> to vector<1x512xf32>
    %271 = vector.extract_strided_slice %235 {offsets = [5, 0, 0], sizes = [1, 8, 1], strides = [1, 1, 1]} : vector<8x8x1xf32> to vector<1x8x1xf32>
    %272 = vector.shape_cast %271 : vector<1x8x1xf32> to vector<8x1xf32>
    %273 = vector.broadcast %270 : vector<1x512xf32> to vector<8x512xf32>
    %274 = vector.broadcast %272 : vector<8x1xf32> to vector<8x512xf32>
    %275 = arith.mulf %273, %274 : vector<8x512xf32>
    %276 = arith.addf %269, %275 : vector<8x512xf32>
    %277 = vector.extract_strided_slice %234 {offsets = [6, 0], sizes = [1, 512], strides = [1, 1]} : vector<8x512xf32> to vector<1x512xf32>
    %278 = vector.extract_strided_slice %235 {offsets = [6, 0, 0], sizes = [1, 8, 1], strides = [1, 1, 1]} : vector<8x8x1xf32> to vector<1x8x1xf32>
    %279 = vector.shape_cast %278 : vector<1x8x1xf32> to vector<8x1xf32>
    %280 = vector.broadcast %277 : vector<1x512xf32> to vector<8x512xf32>
    %281 = vector.broadcast %279 : vector<8x1xf32> to vector<8x512xf32>
    %282 = arith.mulf %280, %281 : vector<8x512xf32>
    %283 = arith.addf %276, %282 : vector<8x512xf32>
    %284 = vector.extract_strided_slice %234 {offsets = [7, 0], sizes = [1, 512], strides = [1, 1]} : vector<8x512xf32> to vector<1x512xf32>
    %285 = vector.extract_strided_slice %235 {offsets = [7, 0, 0], sizes = [1, 8, 1], strides = [1, 1, 1]} : vector<8x8x1xf32> to vector<1x8x1xf32>
    %286 = vector.shape_cast %285 : vector<1x8x1xf32> to vector<8x1xf32>
    %287 = vector.broadcast %284 : vector<1x512xf32> to vector<8x512xf32>
    %288 = vector.broadcast %286 : vector<8x1xf32> to vector<8x512xf32>
    %289 = arith.mulf %287, %288 : vector<8x512xf32>
    %290 = arith.addf %283, %289 : vector<8x512xf32>
    %cst_40 = arith.constant dense<0.000000e+00> : vector<8xf32>
    %291 = vector.multi_reduction <add>, %290, %cst_40 [1] : vector<8x512xf32> to vector<8xf32>
    %292 = vector.shape_cast %291 : vector<8xf32> to vector<8x1xf32>
    %293 = arith.mulf %290, %290 : vector<8x512xf32>
    %cst_41 = arith.constant dense<0.000000e+00> : vector<8xf32>
    %294 = vector.multi_reduction <add>, %293, %cst_41 [1] : vector<8x512xf32> to vector<8xf32>
    %295 = vector.shape_cast %294 : vector<8xf32> to vector<8x1xf32>
    %cst_42 = arith.constant 0.001953125 : f32
    %296 = vector.broadcast %cst_42 : f32 to vector<8x1xf32>
    %297 = arith.mulf %292, %296 : vector<8x1xf32>
    %cst_43 = arith.constant 0.001953125 : f32
    %298 = vector.broadcast %cst_43 : f32 to vector<8x1xf32>
    %299 = arith.mulf %295, %298 : vector<8x1xf32>
    %300 = arith.mulf %297, %297 : vector<8x1xf32>
    %301 = arith.subf %299, %300 : vector<8x1xf32>
    %302 = vector.broadcast %297 : vector<8x1xf32> to vector<8x512xf32>
    %303 = arith.subf %290, %302 : vector<8x512xf32>
    %cst_44 = arith.constant 9.99999974E-6 : f32
    %304 = vector.broadcast %cst_44 : f32 to vector<8x1xf32>
    %305 = arith.addf %301, %304 : vector<8x1xf32>
    %306 = math.rsqrt %305 : vector<8x1xf32>
    %307 = vector.broadcast %306 : vector<8x1xf32> to vector<8x512xf32>
    %308 = arith.mulf %303, %307 : vector<8x512xf32>
    %309 = vector.broadcast %0 : vector<8x1xf32> to vector<8x512xf32>
    %310 = arith.mulf %308, %309 : vector<8x512xf32>
    %cst_45 = arith.constant 0.000000e+00 : f32
    %311 = vector.broadcast %cst_45 : f32 to vector<8x512xf32>
    %312 = arith.maximumf %310, %311 : vector<8x512xf32>
    %c0_46 = arith.constant 0 : index
    %c0_47 = arith.constant 0 : index
    %c0_48 = arith.constant 0 : index
    %313 = vector.load %arg7[%c0_46, %c0_47, %c0_48] : memref<9x8x1xf32, #tpu.memory_space<vmem>>, vector<9x8x1xf32>
    %314 = vector.extract_strided_slice %313 {offsets = [4, 0, 0], sizes = [1, 8, 1], strides = [1, 1, 1]} : vector<9x8x1xf32> to vector<1x8x1xf32>
    %315 = vector.shape_cast %314 : vector<1x8x1xf32> to vector<8x1xf32>
    %316 = vector.broadcast %315 : vector<8x1xf32> to vector<8x512xf32>
    %317 = arith.mulf %312, %316 : vector<8x512xf32>
    %c17_i32_49 = arith.constant 17 : i32
    %318 = tpu.dynamic_rotate %312 by %c17_i32_49 dim 1 : vector<8x512xf32>, i32 -> vector<8x512xf32>
    %319 = vector.broadcast %2 : vector<1x512xf32> to vector<8x512xf32>
    %320 = arith.mulf %318, %319 : vector<8x512xf32>
    %321 = vector.extract_strided_slice %313 {offsets = [0, 0, 0], sizes = [1, 8, 1], strides = [1, 1, 1]} : vector<9x8x1xf32> to vector<1x8x1xf32>
    %322 = vector.shape_cast %321 : vector<1x8x1xf32> to vector<8x1xf32>
    %323 = vector.broadcast %322 : vector<8x1xf32> to vector<8x512xf32>
    %324 = arith.mulf %320, %323 : vector<8x512xf32>
    %325 = arith.addf %317, %324 : vector<8x512xf32>
    %c16_i32_50 = arith.constant 16 : i32
    %326 = tpu.dynamic_rotate %312 by %c16_i32_50 dim 1 : vector<8x512xf32>, i32 -> vector<8x512xf32>
    %327 = vector.broadcast %3 : vector<1x512xf32> to vector<8x512xf32>
    %328 = arith.mulf %326, %327 : vector<8x512xf32>
    %329 = vector.extract_strided_slice %313 {offsets = [1, 0, 0], sizes = [1, 8, 1], strides = [1, 1, 1]} : vector<9x8x1xf32> to vector<1x8x1xf32>
    %330 = vector.shape_cast %329 : vector<1x8x1xf32> to vector<8x1xf32>
    %331 = vector.broadcast %330 : vector<8x1xf32> to vector<8x512xf32>
    %332 = arith.mulf %328, %331 : vector<8x512xf32>
    %333 = arith.addf %325, %332 : vector<8x512xf32>
    %c15_i32_51 = arith.constant 15 : i32
    %334 = tpu.dynamic_rotate %312 by %c15_i32_51 dim 1 : vector<8x512xf32>, i32 -> vector<8x512xf32>
    %335 = vector.broadcast %4 : vector<1x512xf32> to vector<8x512xf32>
    %336 = arith.mulf %334, %335 : vector<8x512xf32>
    %337 = vector.extract_strided_slice %313 {offsets = [2, 0, 0], sizes = [1, 8, 1], strides = [1, 1, 1]} : vector<9x8x1xf32> to vector<1x8x1xf32>
    %338 = vector.shape_cast %337 : vector<1x8x1xf32> to vector<8x1xf32>
    %339 = vector.broadcast %338 : vector<8x1xf32> to vector<8x512xf32>
    %340 = arith.mulf %336, %339 : vector<8x512xf32>
    %341 = arith.addf %333, %340 : vector<8x512xf32>
    %c1_i32_52 = arith.constant 1 : i32
    %342 = tpu.dynamic_rotate %312 by %c1_i32_52 dim 1 : vector<8x512xf32>, i32 -> vector<8x512xf32>
    %343 = vector.broadcast %5 : vector<1x512xf32> to vector<8x512xf32>
    %344 = arith.mulf %342, %343 : vector<8x512xf32>
    %345 = vector.extract_strided_slice %313 {offsets = [3, 0, 0], sizes = [1, 8, 1], strides = [1, 1, 1]} : vector<9x8x1xf32> to vector<1x8x1xf32>
    %346 = vector.shape_cast %345 : vector<1x8x1xf32> to vector<8x1xf32>
    %347 = vector.broadcast %346 : vector<8x1xf32> to vector<8x512xf32>
    %348 = arith.mulf %344, %347 : vector<8x512xf32>
    %349 = arith.addf %341, %348 : vector<8x512xf32>
    %c511_i32_53 = arith.constant 511 : i32
    %350 = tpu.dynamic_rotate %312 by %c511_i32_53 dim 1 : vector<8x512xf32>, i32 -> vector<8x512xf32>
    %351 = vector.broadcast %6 : vector<1x512xf32> to vector<8x512xf32>
    %352 = arith.mulf %350, %351 : vector<8x512xf32>
    %353 = vector.extract_strided_slice %313 {offsets = [5, 0, 0], sizes = [1, 8, 1], strides = [1, 1, 1]} : vector<9x8x1xf32> to vector<1x8x1xf32>
    %354 = vector.shape_cast %353 : vector<1x8x1xf32> to vector<8x1xf32>
    %355 = vector.broadcast %354 : vector<8x1xf32> to vector<8x512xf32>
    %356 = arith.mulf %352, %355 : vector<8x512xf32>
    %357 = arith.addf %349, %356 : vector<8x512xf32>
    %c497_i32_54 = arith.constant 497 : i32
    %358 = tpu.dynamic_rotate %312 by %c497_i32_54 dim 1 : vector<8x512xf32>, i32 -> vector<8x512xf32>
    %359 = vector.broadcast %7 : vector<1x512xf32> to vector<8x512xf32>
    %360 = arith.mulf %358, %359 : vector<8x512xf32>
    %361 = vector.extract_strided_slice %313 {offsets = [6, 0, 0], sizes = [1, 8, 1], strides = [1, 1, 1]} : vector<9x8x1xf32> to vector<1x8x1xf32>
    %362 = vector.shape_cast %361 : vector<1x8x1xf32> to vector<8x1xf32>
    %363 = vector.broadcast %362 : vector<8x1xf32> to vector<8x512xf32>
    %364 = arith.mulf %360, %363 : vector<8x512xf32>
    %365 = arith.addf %357, %364 : vector<8x512xf32>
    %c496_i32_55 = arith.constant 496 : i32
    %366 = tpu.dynamic_rotate %312 by %c496_i32_55 dim 1 : vector<8x512xf32>, i32 -> vector<8x512xf32>
    %367 = vector.broadcast %8 : vector<1x512xf32> to vector<8x512xf32>
    %368 = arith.mulf %366, %367 : vector<8x512xf32>
    %369 = vector.extract_strided_slice %313 {offsets = [7, 0, 0], sizes = [1, 8, 1], strides = [1, 1, 1]} : vector<9x8x1xf32> to vector<1x8x1xf32>
    %370 = vector.shape_cast %369 : vector<1x8x1xf32> to vector<8x1xf32>
    %371 = vector.broadcast %370 : vector<8x1xf32> to vector<8x512xf32>
    %372 = arith.mulf %368, %371 : vector<8x512xf32>
    %373 = arith.addf %365, %372 : vector<8x512xf32>
    %c495_i32_56 = arith.constant 495 : i32
    %374 = tpu.dynamic_rotate %312 by %c495_i32_56 dim 1 : vector<8x512xf32>, i32 -> vector<8x512xf32>
    %375 = vector.broadcast %9 : vector<1x512xf32> to vector<8x512xf32>
    %376 = arith.mulf %374, %375 : vector<8x512xf32>
    %377 = vector.extract_strided_slice %313 {offsets = [8, 0, 0], sizes = [1, 8, 1], strides = [1, 1, 1]} : vector<9x8x1xf32> to vector<1x8x1xf32>
    %378 = vector.shape_cast %377 : vector<1x8x1xf32> to vector<8x1xf32>
    %379 = vector.broadcast %378 : vector<8x1xf32> to vector<8x512xf32>
    %380 = arith.mulf %376, %379 : vector<8x512xf32>
    %381 = arith.addf %373, %380 : vector<8x512xf32>
    %cst_57 = arith.constant dense<0.000000e+00> : vector<8xf32>
    %382 = vector.multi_reduction <add>, %381, %cst_57 [1] : vector<8x512xf32> to vector<8xf32>
    %383 = vector.shape_cast %382 : vector<8xf32> to vector<8x1xf32>
    %384 = arith.mulf %381, %381 : vector<8x512xf32>
    %cst_58 = arith.constant dense<0.000000e+00> : vector<8xf32>
    %385 = vector.multi_reduction <add>, %384, %cst_58 [1] : vector<8x512xf32> to vector<8xf32>
    %386 = vector.shape_cast %385 : vector<8xf32> to vector<8x1xf32>
    %cst_59 = arith.constant 0.001953125 : f32
    %387 = vector.broadcast %cst_59 : f32 to vector<8x1xf32>
    %388 = arith.mulf %383, %387 : vector<8x1xf32>
    %cst_60 = arith.constant 0.001953125 : f32
    %389 = vector.broadcast %cst_60 : f32 to vector<8x1xf32>
    %390 = arith.mulf %386, %389 : vector<8x1xf32>
    %391 = arith.mulf %388, %388 : vector<8x1xf32>
    %392 = arith.subf %390, %391 : vector<8x1xf32>
    %393 = vector.broadcast %388 : vector<8x1xf32> to vector<8x512xf32>
    %394 = arith.subf %381, %393 : vector<8x512xf32>
    %cst_61 = arith.constant 9.99999974E-6 : f32
    %395 = vector.broadcast %cst_61 : f32 to vector<8x1xf32>
    %396 = arith.addf %392, %395 : vector<8x1xf32>
    %397 = math.rsqrt %396 : vector<8x1xf32>
    %398 = vector.broadcast %397 : vector<8x1xf32> to vector<8x512xf32>
    %399 = arith.mulf %394, %398 : vector<8x512xf32>
    %c0_62 = arith.constant 0 : index
    %c0_63 = arith.constant 0 : index
    %c0_64 = arith.constant 0 : index
    %400 = vector.load %arg8[%c0_62, %c0_63, %c0_64] : memref<8x12x1xf32, #tpu.memory_space<vmem>>, vector<8x12x1xf32>
    %401 = vector.extract_strided_slice %399 {offsets = [0, 0], sizes = [1, 512], strides = [1, 1]} : vector<8x512xf32> to vector<1x512xf32>
    %402 = vector.extract_strided_slice %400 {offsets = [0, 0, 0], sizes = [1, 12, 1], strides = [1, 1, 1]} : vector<8x12x1xf32> to vector<1x12x1xf32>
    %403 = vector.shape_cast %402 : vector<1x12x1xf32> to vector<12x1xf32>
    %404 = vector.broadcast %401 : vector<1x512xf32> to vector<12x512xf32>
    %405 = vector.broadcast %403 : vector<12x1xf32> to vector<12x512xf32>
    %406 = arith.mulf %404, %405 : vector<12x512xf32>
    %407 = vector.extract_strided_slice %399 {offsets = [1, 0], sizes = [1, 512], strides = [1, 1]} : vector<8x512xf32> to vector<1x512xf32>
    %408 = vector.extract_strided_slice %400 {offsets = [1, 0, 0], sizes = [1, 12, 1], strides = [1, 1, 1]} : vector<8x12x1xf32> to vector<1x12x1xf32>
    %409 = vector.shape_cast %408 : vector<1x12x1xf32> to vector<12x1xf32>
    %410 = vector.broadcast %407 : vector<1x512xf32> to vector<12x512xf32>
    %411 = vector.broadcast %409 : vector<12x1xf32> to vector<12x512xf32>
    %412 = arith.mulf %410, %411 : vector<12x512xf32>
    %413 = arith.addf %406, %412 : vector<12x512xf32>
    %414 = vector.extract_strided_slice %399 {offsets = [2, 0], sizes = [1, 512], strides = [1, 1]} : vector<8x512xf32> to vector<1x512xf32>
    %415 = vector.extract_strided_slice %400 {offsets = [2, 0, 0], sizes = [1, 12, 1], strides = [1, 1, 1]} : vector<8x12x1xf32> to vector<1x12x1xf32>
    %416 = vector.shape_cast %415 : vector<1x12x1xf32> to vector<12x1xf32>
    %417 = vector.broadcast %414 : vector<1x512xf32> to vector<12x512xf32>
    %418 = vector.broadcast %416 : vector<12x1xf32> to vector<12x512xf32>
    %419 = arith.mulf %417, %418 : vector<12x512xf32>
    %420 = arith.addf %413, %419 : vector<12x512xf32>
    %421 = vector.extract_strided_slice %399 {offsets = [3, 0], sizes = [1, 512], strides = [1, 1]} : vector<8x512xf32> to vector<1x512xf32>
    %422 = vector.extract_strided_slice %400 {offsets = [3, 0, 0], sizes = [1, 12, 1], strides = [1, 1, 1]} : vector<8x12x1xf32> to vector<1x12x1xf32>
    %423 = vector.shape_cast %422 : vector<1x12x1xf32> to vector<12x1xf32>
    %424 = vector.broadcast %421 : vector<1x512xf32> to vector<12x512xf32>
    %425 = vector.broadcast %423 : vector<12x1xf32> to vector<12x512xf32>
    %426 = arith.mulf %424, %425 : vector<12x512xf32>
    %427 = arith.addf %420, %426 : vector<12x512xf32>
    %428 = vector.extract_strided_slice %399 {offsets = [4, 0], sizes = [1, 512], strides = [1, 1]} : vector<8x512xf32> to vector<1x512xf32>
    %429 = vector.extract_strided_slice %400 {offsets = [4, 0, 0], sizes = [1, 12, 1], strides = [1, 1, 1]} : vector<8x12x1xf32> to vector<1x12x1xf32>
    %430 = vector.shape_cast %429 : vector<1x12x1xf32> to vector<12x1xf32>
    %431 = vector.broadcast %428 : vector<1x512xf32> to vector<12x512xf32>
    %432 = vector.broadcast %430 : vector<12x1xf32> to vector<12x512xf32>
    %433 = arith.mulf %431, %432 : vector<12x512xf32>
    %434 = arith.addf %427, %433 : vector<12x512xf32>
    %435 = vector.extract_strided_slice %399 {offsets = [5, 0], sizes = [1, 512], strides = [1, 1]} : vector<8x512xf32> to vector<1x512xf32>
    %436 = vector.extract_strided_slice %400 {offsets = [5, 0, 0], sizes = [1, 12, 1], strides = [1, 1, 1]} : vector<8x12x1xf32> to vector<1x12x1xf32>
    %437 = vector.shape_cast %436 : vector<1x12x1xf32> to vector<12x1xf32>
    %438 = vector.broadcast %435 : vector<1x512xf32> to vector<12x512xf32>
    %439 = vector.broadcast %437 : vector<12x1xf32> to vector<12x512xf32>
    %440 = arith.mulf %438, %439 : vector<12x512xf32>
    %441 = arith.addf %434, %440 : vector<12x512xf32>
    %442 = vector.extract_strided_slice %399 {offsets = [6, 0], sizes = [1, 512], strides = [1, 1]} : vector<8x512xf32> to vector<1x512xf32>
    %443 = vector.extract_strided_slice %400 {offsets = [6, 0, 0], sizes = [1, 12, 1], strides = [1, 1, 1]} : vector<8x12x1xf32> to vector<1x12x1xf32>
    %444 = vector.shape_cast %443 : vector<1x12x1xf32> to vector<12x1xf32>
    %445 = vector.broadcast %442 : vector<1x512xf32> to vector<12x512xf32>
    %446 = vector.broadcast %444 : vector<12x1xf32> to vector<12x512xf32>
    %447 = arith.mulf %445, %446 : vector<12x512xf32>
    %448 = arith.addf %441, %447 : vector<12x512xf32>
    %449 = vector.extract_strided_slice %399 {offsets = [7, 0], sizes = [1, 512], strides = [1, 1]} : vector<8x512xf32> to vector<1x512xf32>
    %450 = vector.extract_strided_slice %400 {offsets = [7, 0, 0], sizes = [1, 12, 1], strides = [1, 1, 1]} : vector<8x12x1xf32> to vector<1x12x1xf32>
    %451 = vector.shape_cast %450 : vector<1x12x1xf32> to vector<12x1xf32>
    %452 = vector.broadcast %449 : vector<1x512xf32> to vector<12x512xf32>
    %453 = vector.broadcast %451 : vector<12x1xf32> to vector<12x512xf32>
    %454 = arith.mulf %452, %453 : vector<12x512xf32>
    %455 = arith.addf %448, %454 : vector<12x512xf32>
    %cst_65 = arith.constant dense<0.000000e+00> : vector<12xf32>
    %456 = vector.multi_reduction <add>, %455, %cst_65 [1] : vector<12x512xf32> to vector<12xf32>
    %457 = vector.shape_cast %456 : vector<12xf32> to vector<12x1xf32>
    %458 = arith.mulf %455, %455 : vector<12x512xf32>
    %cst_66 = arith.constant dense<0.000000e+00> : vector<12xf32>
    %459 = vector.multi_reduction <add>, %458, %cst_66 [1] : vector<12x512xf32> to vector<12xf32>
    %460 = vector.shape_cast %459 : vector<12xf32> to vector<12x1xf32>
    %cst_67 = arith.constant 0.001953125 : f32
    %461 = vector.broadcast %cst_67 : f32 to vector<12x1xf32>
    %462 = arith.mulf %457, %461 : vector<12x1xf32>
    %cst_68 = arith.constant 0.001953125 : f32
    %463 = vector.broadcast %cst_68 : f32 to vector<12x1xf32>
    %464 = arith.mulf %460, %463 : vector<12x1xf32>
    %465 = arith.mulf %462, %462 : vector<12x1xf32>
    %466 = arith.subf %464, %465 : vector<12x1xf32>
    %467 = vector.broadcast %462 : vector<12x1xf32> to vector<12x512xf32>
    %468 = arith.subf %455, %467 : vector<12x512xf32>
    %cst_69 = arith.constant 9.99999974E-6 : f32
    %469 = vector.broadcast %cst_69 : f32 to vector<12x1xf32>
    %470 = arith.addf %466, %469 : vector<12x1xf32>
    %471 = math.rsqrt %470 : vector<12x1xf32>
    %472 = vector.broadcast %471 : vector<12x1xf32> to vector<12x512xf32>
    %473 = arith.mulf %468, %472 : vector<12x512xf32>
    %cst_70 = arith.constant 0.000000e+00 : f32
    %474 = vector.broadcast %cst_70 : f32 to vector<12x512xf32>
    %475 = arith.maximumf %473, %474 : vector<12x512xf32>
    %c0_71 = arith.constant 0 : index
    %c0_72 = arith.constant 0 : index
    %476 = vector.load %arg9[%c0_71, %c0_72] : memref<12x512xf32, #tpu.memory_space<vmem>>, vector<12x512xf32>
    tpu.vector_store %arg9[%c0_71, %c0_72], %475 {strides = array<i32>} : memref<12x512xf32, #tpu.memory_space<vmem>>, vector<12x512xf32>,
    return
  }
}

</mosaic_0001>

<llo_original>
// kernel: tpu_custom_call.1
$region0: #{tpu_custom_call.1}
  #allocation0 [shape = 'u32[]', space=smem, size = 0x4, offset = 0x4, fixed_abs, tag = 'smem constant byte address 0x4 - core index']
  #allocation1 [shape = 'u32[144,128]{1,0:T(1,128)}', space=vmem, size = 0x12000, scoped, tag = 'internal scratch']
  %s0 = inlined_call_operand.vmem [shape: f32[4,512], index: 0, kind: input, shape index: {}]
  %s1 = inlined_call_operand.vmem [shape: f32[8,1], index: 1, kind: input, shape index: {}]
  %s2 = inlined_call_operand.vmem [shape: f32[9,512], index: 2, kind: input, shape index: {}]
  %s3 = inlined_call_operand.vmem [shape: f32[9,4,1], index: 3, kind: input, shape index: {}]
  %s4 = inlined_call_operand.vmem [shape: f32[4,8,1], index: 4, kind: input, shape index: {}]
  %s5 = inlined_call_operand.vmem [shape: f32[9,8,1], index: 5, kind: input, shape index: {}]
  %s6 = inlined_call_operand.vmem [shape: f32[8,8,1], index: 6, kind: input, shape index: {}]
  %s7 = inlined_call_operand.vmem [shape: f32[9,8,1], index: 7, kind: input, shape index: {}]
  %s8 = inlined_call_operand.vmem [shape: f32[8,12,1], index: 8, kind: input, shape index: {}]
  %s9 = inlined_call_operand.hbm [shape: f32[12,512], index: 9, kind: output, shape index: {}]
  %s10 = sld [smem:[#allocation0]]
  $region46: #{tpu_custom_call.1} parent=0
    _
  %s12 = ssub.s32 1, %s10
  %s13 = scalar_select 0, %s12, %s10
  $region1: #{tpu_custom_call.1} parent=0
    #allocation2 [shape = 'u8[32768]{0}', space=vmem, size = 0x8000, scoped, tag = 'output window, operand 0, single buffered']
    #allocation3 [shape = 's32[1]{0}', space=sflag, size = 0x4, scoped, tag = 'scoped memory for tpu_custom_call.1']
    %14 = vsyncpa [#allocation3], 0
    // Predicated region
    $region2: #{tpu_custom_call.1} parent=1 // pred_check
      _
    $region3: #{tpu_custom_call.1} parent=1 // pred_check_branch
      %16 = sbr.rel (0) target = $region5
    $region4: #{tpu_custom_call.1} parent=1 // pred_region
      _
    $region5: #{tpu_custom_call.1} parent=1 // pred_fallthru
      _
    // Predicated region
    $region6: #{tpu_custom_call.1} parent=1 // pred_check
      _
    $region7: #{tpu_custom_call.1} parent=1 // pred_check_branch
      %18 = sbr.rel (0) target = $region9
    $region8: #{tpu_custom_call.1} parent=1 // pred_region
      _
    $region9: #{tpu_custom_call.1} parent=1 // pred_fallthru
      _
    // Predicated region
    $region10: #{tpu_custom_call.1} parent=1 // pred_check
      _
    $region11: #{tpu_custom_call.1} parent=1 // pred_check_branch
      %20 = sbr.rel (0) target = $region13
    $region12: #{tpu_custom_call.1} parent=1 // pred_region
      _
    $region13: #{tpu_custom_call.1} parent=1 // pred_fallthru
      _
    // Predicated region
    $region14: #{tpu_custom_call.1} parent=1 // pred_check
      _
    $region15: #{tpu_custom_call.1} parent=1 // pred_check_branch
      %22 = sbr.rel (0) target = $region17
    $region16: #{tpu_custom_call.1} parent=1 // pred_region
      _
    $region17: #{tpu_custom_call.1} parent=1 // pred_fallthru
      _
    // Predicated region
    $region18: #{tpu_custom_call.1} parent=1 // pred_check
      _
    $region19: #{tpu_custom_call.1} parent=1 // pred_check_branch
      %24 = sbr.rel (0) target = $region21
    $region20: #{tpu_custom_call.1} parent=1 // pred_region
      _
    $region21: #{tpu_custom_call.1} parent=1 // pred_fallthru
      _
    // Predicated region
    $region22: #{tpu_custom_call.1} parent=1 // pred_check
      _
    $region23: #{tpu_custom_call.1} parent=1 // pred_check_branch
      %26 = sbr.rel (0) target = $region25
    $region24: #{tpu_custom_call.1} parent=1 // pred_region
      _
    $region25: #{tpu_custom_call.1} parent=1 // pred_fallthru
      _
    // Predicated region
    $region26: #{tpu_custom_call.1} parent=1 // pred_check
      _
    $region27: #{tpu_custom_call.1} parent=1 // pred_check_branch
      %28 = sbr.rel (0) target = $region29
    $region28: #{tpu_custom_call.1} parent=1 // pred_region
      _
    $region29: #{tpu_custom_call.1} parent=1 // pred_fallthru
      _
    // Predicated region
    $region30: #{tpu_custom_call.1} parent=1 // pred_check
      _
    $region31: #{tpu_custom_call.1} parent=1 // pred_check_branch
      %30 = sbr.rel (0) target = $region33
    $region32: #{tpu_custom_call.1} parent=1 // pred_region
      _
    $region33: #{tpu_custom_call.1} parent=1 // pred_fallthru
      _
    // Predicated region
    $region34: #{tpu_custom_call.1} parent=1 // pred_check
      _
    $region35: #{tpu_custom_call.1} parent=1 // pred_check_branch
      %32 = sbr.rel (0) target = $region37
    $region36: #{tpu_custom_call.1} parent=1 // pred_region
      _
    $region37: #{tpu_custom_call.1} parent=1 // pred_fallthru
      _
    %v33 = vld [vmem:[%s1] sm:$0xff]
    %v34 = vld [vmem:[%s2] sm:$0xff]
    %v35 = vld [vmem:[%s2 + $0x8] sm:$0xff]
    %v36 = vld [vmem:[%s2 + $0x10] sm:$0xff]
    %v37 = vld [vmem:[%s2 + $0x18] sm:$0xff]
    %v38 = vld [vmem:[%s2 + $0x20] sm:$0x1]
    %v39 = vld [vmem:[%s2 + $0x28] sm:$0x1]
    %v40 = vld [vmem:[%s2 + $0x30] sm:$0x1]
    %v41 = vld [vmem:[%s2 + $0x38] sm:$0x1]
    %v42 = vld [vmem:[%s0] sm:$0xff]
    %v43 = vld [vmem:[%s0 + $0x8] sm:$0xff]
    %v44 = vld [vmem:[%s3] sm:$0xf]
    %v45 = vld [vmem:[%s3 + $0x4] sm:$0xf]
    %v46 = vld [vmem:[%s3 + $0x8] sm:$0xf]
    %v47 = vld [vmem:[%s3 + $0xc] sm:$0xf]
    %v48 = vld [vmem:[%s3 + $0x10] sm:$0xf]
    %v49 = vld [vmem:[%s3 + $0x14] sm:$0xf]
    %v50 = vld [vmem:[%s3 + $0x18] sm:$0xf]
    %v51 = vld [vmem:[%s3 + $0x1c] sm:$0xf]
    %v52 = vld [vmem:[%s3 + $0x20] sm:$0xf]
    %54 = vset.pattern.permute.xlu0 0
    %55 = vperm.xlu0 %54, %v48
    %v56 = vpop.permute.xlu0 %55
    %v58 = vunpack.c.l.s4 839922192
    %v59 = vunpack.c.0.s8 %v58
    %v60 = vlaneseq
    %v61 = vshrl.u32 %v60, 7
    %v62 = vsub.s32 %v59, %v61
    %v63 = vrot.slane %v56, %v62
    %v65 = vmul.f32 %v42, %v63
    %v66 = vmul.f32 %v43, %v63
    %v69 = vcombine.high %v42, %v42
    %v70 = vcombine.high %v43, %v43
    %73 = vrot.lane.b32.xlu0 %v42, 17
    %v74 = vpop.permute.xlu0 %73
    %75 = vrot.lane.b32.xlu0 %v69, 17
    %v76 = vpop.permute.xlu0 %75
    %77 = vrot.lane.b32.xlu0 %v43, 17
    %v78 = vpop.permute.xlu0 %77
    %79 = vrot.lane.b32.xlu0 %v70, 17
    %v80 = vpop.permute.xlu0 %79
    %v81 = vlaneseq
    %v82 = vand.u32 %v81, 127
    %vm83 = vcmp.lt.s32.totalorder %v82, 17
    %v84 = vsel %vm83, %v78, %v80
    %v85 = vsel %vm83, %v76, %v78
    %v86 = vsel %vm83, %v74, %v76
    %v87 = vsel %vm83, %v80, %v74
    %v88 = vlaneseq
    %v89 = vshrl.u32 %v88, 7
    %v90 = vsub.s32 0, %v89
    %v91 = vrot.slane %v34, %v90
    %v92 = vlaneseq
    %v93 = vshrl.u32 %v92, 7
    %v94 = vsub.s32 0, %v93
    %v95 = vrot.slane %v35, %v94
    %v96 = vlaneseq
    %v97 = vshrl.u32 %v96, 7
    %v98 = vsub.s32 0, %v97
    %v99 = vrot.slane %v36, %v98
    %v100 = vlaneseq
    %v101 = vshrl.u32 %v100, 7
    %v102 = vsub.s32 0, %v101
    %v103 = vrot.slane %v37, %v102
    %v104 = vmul.f32 %v87, %v91
    %v105 = vmul.f32 %v86, %v95
    %v106 = vmul.f32 %v85, %v99
    %v107 = vmul.f32 %v84, %v103
    %109 = vset.pattern.permute.xlu0 0
    %110 = vperm.xlu0 %109, %v44
    %v111 = vpop.permute.xlu0 %110
    %v113 = vmul.f32 %v104, %v111
    %v114 = vmul.f32 %v105, %v111
    %v115 = vmul.f32 %v106, %v111
    %v116 = vmul.f32 %v107, %v111
    %v121 = vcombine.low %v113, %v114
    %v122 = vcombine.low %v115, %v116
    %v125 = vadd.f32 %v65, %v121
    %v126 = vadd.f32 %v66, %v122
    %127 = vrot.lane.b32.xlu0 %v42, 16
    %v128 = vpop.permute.xlu0 %127
    %129 = vrot.lane.b32.xlu0 %v69, 16
    %v130 = vpop.permute.xlu0 %129
    %131 = vrot.lane.b32.xlu0 %v43, 16
    %v132 = vpop.permute.xlu0 %131
    %133 = vrot.lane.b32.xlu0 %v70, 16
    %v134 = vpop.permute.xlu0 %133
    %vm135 = vcmp.lt.s32.totalorder %v82, 16
    %v136 = vsel %vm135, %v132, %v134
    %v137 = vsel %vm135, %v130, %v132
    %v138 = vsel %vm135, %v128, %v130
    %v139 = vsel %vm135, %v134, %v128
    %v140 = vlaneseq
    %v141 = vshrl.u32 %v140, 7
    %v142 = vsub.s32 1, %v141
    %v143 = vrot.slane %v34, %v142
    %v144 = vlaneseq
    %v145 = vshrl.u32 %v144, 7
    %v146 = vsub.s32 1, %v145
    %v147 = vrot.slane %v35, %v146
    %v148 = vlaneseq
    %v149 = vshrl.u32 %v148, 7
    %v150 = vsub.s32 1, %v149
    %v151 = vrot.slane %v36, %v150
    %v152 = vlaneseq
    %v153 = vshrl.u32 %v152, 7
    %v154 = vsub.s32 1, %v153
    %v155 = vrot.slane %v37, %v154
    %v156 = vmul.f32 %v139, %v143
    %v157 = vmul.f32 %v138, %v147
    %v158 = vmul.f32 %v137, %v151
    %v159 = vmul.f32 %v136, %v155
    %161 = vset.pattern.permute.xlu0 0
    %162 = vperm.xlu0 %161, %v45
    %v163 = vpop.permute.xlu0 %162
    %v165 = vmul.f32 %v156, %v163
    %v166 = vmul.f32 %v157, %v163
    %v167 = vmul.f32 %v158, %v163
    %v168 = vmul.f32 %v159, %v163
    %v173 = vcombine.low %v165, %v166
    %v174 = vcombine.low %v167, %v168
    %v177 = vadd.f32 %v125, %v173
    %v178 = vadd.f32 %v126, %v174
    %179 = vrot.lane.b32.xlu0 %v42, 15
    %v180 = vpop.permute.xlu0 %179
    %181 = vrot.lane.b32.xlu0 %v69, 15
    %v182 = vpop.permute.xlu0 %181
    %183 = vrot.lane.b32.xlu0 %v43, 15
    %v184 = vpop.permute.xlu0 %183
    %185 = vrot.lane.b32.xlu0 %v70, 15
    %v186 = vpop.permute.xlu0 %185
    %vm187 = vcmp.lt.s32.totalorder %v82, 15
    %v188 = vsel %vm187, %v184, %v186
    %v189 = vsel %vm187, %v182, %v184
    %v190 = vsel %vm187, %v180, %v182
    %v191 = vsel %vm187, %v186, %v180
    %v192 = vlaneseq
    %v193 = vshrl.u32 %v192, 7
    %v194 = vsub.s32 2, %v193
    %v195 = vrot.slane %v34, %v194
    %v196 = vlaneseq
    %v197 = vshrl.u32 %v196, 7
    %v198 = vsub.s32 2, %v197
    %v199 = vrot.slane %v35, %v198
    %v200 = vlaneseq
    %v201 = vshrl.u32 %v200, 7
    %v202 = vsub.s32 2, %v201
    %v203 = vrot.slane %v36, %v202
    %v204 = vlaneseq
    %v205 = vshrl.u32 %v204, 7
    %v206 = vsub.s32 2, %v205
    %v207 = vrot.slane %v37, %v206
    %v208 = vmul.f32 %v191, %v195
    %v209 = vmul.f32 %v190, %v199
    %v210 = vmul.f32 %v189, %v203
    %v211 = vmul.f32 %v188, %v207
    %213 = vset.pattern.permute.xlu0 0
    %214 = vperm.xlu0 %213, %v46
    %v215 = vpop.permute.xlu0 %214
    %v217 = vmul.f32 %v208, %v215
    %v218 = vmul.f32 %v209, %v215
    %v219 = vmul.f32 %v210, %v215
    %v220 = vmul.f32 %v211, %v215
    %v225 = vcombine.low %v217, %v218
    %v226 = vcombine.low %v219, %v220
    %v229 = vadd.f32 %v177, %v225
    %v230 = vadd.f32 %v178, %v226
    %231 = vrot.lane.b32.xlu0 %v42, 1
    %v232 = vpop.permute.xlu0 %231
    %233 = vrot.lane.b32.xlu0 %v69, 1
    %v234 = vpop.permute.xlu0 %233
    %235 = vrot.lane.b32.xlu0 %v43, 1
    %v236 = vpop.permute.xlu0 %235
    %237 = vrot.lane.b32.xlu0 %v70, 1
    %v238 = vpop.permute.xlu0 %237
    %vm239 = vcmp.lt.s32.totalorder %v82, 1
    %v240 = vsel %vm239, %v236, %v238
    %v241 = vsel %vm239, %v234, %v236
    %v242 = vsel %vm239, %v232, %v234
    %v243 = vsel %vm239, %v238, %v232
    %v244 = vlaneseq
    %v245 = vshrl.u32 %v244, 7
    %v246 = vsub.s32 3, %v245
    %v247 = vrot.slane %v34, %v246
    %v248 = vlaneseq
    %v249 = vshrl.u32 %v248, 7
    %v250 = vsub.s32 3, %v249
    %v251 = vrot.slane %v35, %v250
    %v252 = vlaneseq
    %v253 = vshrl.u32 %v252, 7
    %v254 = vsub.s32 3, %v253
    %v255 = vrot.slane %v36, %v254
    %v256 = vlaneseq
    %v257 = vshrl.u32 %v256, 7
    %v258 = vsub.s32 3, %v257
    %v259 = vrot.slane %v37, %v258
    %v260 = vmul.f32 %v243, %v247
    %v261 = vmul.f32 %v242, %v251
    %v262 = vmul.f32 %v241, %v255
    %v263 = vmul.f32 %v240, %v259
    %265 = vset.pattern.permute.xlu0 0
    %266 = vperm.xlu0 %265, %v47
    %v267 = vpop.permute.xlu0 %266
    %v269 = vmul.f32 %v260, %v267
    %v270 = vmul.f32 %v261, %v267
    %v271 = vmul.f32 %v262, %v267
    %v272 = vmul.f32 %v263, %v267
    %v277 = vcombine.low %v269, %v270
    %v278 = vcombine.low %v271, %v272
    %v281 = vadd.f32 %v229, %v277
    %v282 = vadd.f32 %v230, %v278
    %283 = vrot.lane.b32.xlu0 %v42, 127
    %v284 = vpop.permute.xlu0 %283
    %285 = vrot.lane.b32.xlu0 %v69, 127
    %v286 = vpop.permute.xlu0 %285
    %287 = vrot.lane.b32.xlu0 %v43, 127
    %v288 = vpop.permute.xlu0 %287
    %289 = vrot.lane.b32.xlu0 %v70, 127
    %v290 = vpop.permute.xlu0 %289
    %vm291 = vcmp.lt.s32.totalorder %v82, 127
    %v292 = vsel %vm291, %v288, %v290
    %v293 = vsel %vm291, %v286, %v288
    %v294 = vsel %vm291, %v284, %v286
    %v295 = vsel %vm291, %v290, %v284
    %v296 = vlaneseq
    %v297 = vshrl.u32 %v296, 7
    %v298 = vsub.s32 5, %v297
    %v299 = vrot.slane %v34, %v298
    %v300 = vlaneseq
    %v301 = vshrl.u32 %v300, 7
    %v302 = vsub.s32 5, %v301
    %v303 = vrot.slane %v35, %v302
    %v304 = vlaneseq
    %v305 = vshrl.u32 %v304, 7
    %v306 = vsub.s32 5, %v305
    %v307 = vrot.slane %v36, %v306
    %v308 = vlaneseq
    %v309 = vshrl.u32 %v308, 7
    %v310 = vsub.s32 5, %v309
    %v311 = vrot.slane %v37, %v310
    %v312 = vmul.f32 %v294, %v299
    %v313 = vmul.f32 %v293, %v303
    %v314 = vmul.f32 %v292, %v307
    %v315 = vmul.f32 %v295, %v311
    %317 = vset.pattern.permute.xlu0 0
    %318 = vperm.xlu0 %317, %v49
    %v319 = vpop.permute.xlu0 %318
    %v321 = vmul.f32 %v312, %v319
    %v322 = vmul.f32 %v313, %v319
    %v323 = vmul.f32 %v314, %v319
    %v324 = vmul.f32 %v315, %v319
    %v329 = vcombine.low %v321, %v322
    %v330 = vcombine.low %v323, %v324
    %v333 = vadd.f32 %v281, %v329
    %v334 = vadd.f32 %v282, %v330
    %335 = vrot.lane.b32.xlu0 %v42, 113
    %v336 = vpop.permute.xlu0 %335
    %337 = vrot.lane.b32.xlu0 %v69, 113
    %v338 = vpop.permute.xlu0 %337
    %339 = vrot.lane.b32.xlu0 %v43, 113
    %v340 = vpop.permute.xlu0 %339
    %341 = vrot.lane.b32.xlu0 %v70, 113
    %v342 = vpop.permute.xlu0 %341
    %vm343 = vcmp.lt.s32.totalorder %v82, 113
    %v344 = vsel %vm343, %v340, %v342
    %v345 = vsel %vm343, %v338, %v340
    %v346 = vsel %vm343, %v336, %v338
    %v347 = vsel %vm343, %v342, %v336
    %v348 = vlaneseq
    %v349 = vshrl.u32 %v348, 7
    %v350 = vsub.s32 6, %v349
    %v351 = vrot.slane %v34, %v350
    %v352 = vlaneseq
    %v353 = vshrl.u32 %v352, 7
    %v354 = vsub.s32 6, %v353
    %v355 = vrot.slane %v35, %v354
    %v356 = vlaneseq
    %v357 = vshrl.u32 %v356, 7
    %v358 = vsub.s32 6, %v357
    %v359 = vrot.slane %v36, %v358
    %v360 = vlaneseq
    %v361 = vshrl.u32 %v360, 7
    %v362 = vsub.s32 6, %v361
    %v363 = vrot.slane %v37, %v362
    %v364 = vmul.f32 %v346, %v351
    %v365 = vmul.f32 %v345, %v355
    %v366 = vmul.f32 %v344, %v359
    %v367 = vmul.f32 %v347, %v363
    %369 = vset.pattern.permute.xlu0 0
    %370 = vperm.xlu0 %369, %v50
    %v371 = vpop.permute.xlu0 %370
    %v373 = vmul.f32 %v364, %v371
    %v374 = vmul.f32 %v365, %v371
    %v375 = vmul.f32 %v366, %v371
    %v376 = vmul.f32 %v367, %v371
    %v381 = vcombine.low %v373, %v374
    %v382 = vcombine.low %v375, %v376
    %v385 = vadd.f32 %v333, %v381
    %v386 = vadd.f32 %v334, %v382
    %387 = vrot.lane.b32.xlu0 %v42, 112
    %v388 = vpop.permute.xlu0 %387
    %389 = vrot.lane.b32.xlu0 %v69, 112
    %v390 = vpop.permute.xlu0 %389
    %391 = vrot.lane.b32.xlu0 %v43, 112
    %v392 = vpop.permute.xlu0 %391
    %393 = vrot.lane.b32.xlu0 %v70, 112
    %v394 = vpop.permute.xlu0 %393
    %vm395 = vcmp.lt.s32.totalorder %v82, 112
    %v396 = vsel %vm395, %v392, %v394
    %v397 = vsel %vm395, %v390, %v392
    %v398 = vsel %vm395, %v388, %v390
    %v399 = vsel %vm395, %v394, %v388
    %v400 = vlaneseq
    %v401 = vshrl.u32 %v400, 7
    %v402 = vsub.s32 7, %v401
    %v403 = vrot.slane %v34, %v402
    %v404 = vlaneseq
    %v405 = vshrl.u32 %v404, 7
    %v406 = vsub.s32 7, %v405
    %v407 = vrot.slane %v35, %v406
    %v408 = vlaneseq
    %v409 = vshrl.u32 %v408, 7
    %v410 = vsub.s32 7, %v409
    %v411 = vrot.slane %v36, %v410
    %v412 = vlaneseq
    %v413 = vshrl.u32 %v412, 7
    %v414 = vsub.s32 7, %v413
    %v415 = vrot.slane %v37, %v414
    %v416 = vmul.f32 %v398, %v403
    %v417 = vmul.f32 %v397, %v407
    %v418 = vmul.f32 %v396, %v411
    %v419 = vmul.f32 %v399, %v415
    %421 = vset.pattern.permute.xlu0 0
    %422 = vperm.xlu0 %421, %v51
    %v423 = vpop.permute.xlu0 %422
    %v425 = vmul.f32 %v416, %v423
    %v426 = vmul.f32 %v417, %v423
    %v427 = vmul.f32 %v418, %v423
    %v428 = vmul.f32 %v419, %v423
    %v433 = vcombine.low %v425, %v426
    %v434 = vcombine.low %v427, %v428
    %v437 = vadd.f32 %v385, %v433
    %v438 = vadd.f32 %v386, %v434
    %439 = vrot.lane.b32.xlu0 %v42, 111
    %v440 = vpop.permute.xlu0 %439
    %441 = vrot.lane.b32.xlu0 %v69, 111
    %v442 = vpop.permute.xlu0 %441
    %443 = vrot.lane.b32.xlu0 %v43, 111
    %v444 = vpop.permute.xlu0 %443
    %445 = vrot.lane.b32.xlu0 %v70, 111
    %v446 = vpop.permute.xlu0 %445
    %vm447 = vcmp.lt.s32.totalorder %v82, 111
    %v448 = vsel %vm447, %v444, %v446
    %v449 = vsel %vm447, %v442, %v444
    %v450 = vsel %vm447, %v440, %v442
    %v451 = vsel %vm447, %v446, %v440
    %v452 = vlaneseq
    %v453 = vshrl.u32 %v452, 7
    %v454 = vsub.s32 0, %v453
    %v455 = vrot.slane %v38, %v454
    %v456 = vlaneseq
    %v457 = vshrl.u32 %v456, 7
    %v458 = vsub.s32 0, %v457
    %v459 = vrot.slane %v39, %v458
    %v460 = vlaneseq
    %v461 = vshrl.u32 %v460, 7
    %v462 = vsub.s32 0, %v461
    %v463 = vrot.slane %v40, %v462
    %v464 = vlaneseq
    %v465 = vshrl.u32 %v464, 7
    %v466 = vsub.s32 0, %v465
    %v467 = vrot.slane %v41, %v466
    %v468 = vmul.f32 %v450, %v455
    %v469 = vmul.f32 %v449, %v459
    %v470 = vmul.f32 %v448, %v463
    %v471 = vmul.f32 %v451, %v467
    %473 = vset.pattern.permute.xlu0 0
    %474 = vperm.xlu0 %473, %v52
    %v475 = vpop.permute.xlu0 %474
    %v477 = vmul.f32 %v468, %v475
    %v478 = vmul.f32 %v469, %v475
    %v479 = vmul.f32 %v470, %v475
    %v480 = vmul.f32 %v471, %v475
    %v485 = vcombine.low %v477, %v478
    %v486 = vcombine.low %v479, %v480
    %v489 = vadd.f32 %v437, %v485
    %v490 = vadd.f32 %v438, %v486
    %v493 = vcombine.high %v489, %v489
    %v494 = vcombine.high %v490, %v490
    %vm497 = vcmask 1043456
    %v498 = vsel %vm497, %v489, 0.0
    %v499 = vsel %vm497, %v493, 0.0
    %v500 = vadd.f32 %v498, %v499
    %v501 = vsel %vm497, %v490, 0.0
    %v502 = vadd.f32 %v500, %v501
    %v503 = vsel %vm497, %v494, 0.0
    %v504 = vadd.f32 %v502, %v503
    %505 = vadd.xlane.f32.xlu0 %v504
    %v506 = vpop.xlane.xlu0 %505
    %v507 = vmul.f32 %v489, %v489
    %v508 = vmul.f32 %v490, %v490
    %v511 = vcombine.high %v507, %v507
    %v512 = vcombine.high %v508, %v508
    %v515 = vsel %vm497, %v507, 0.0
    %v516 = vsel %vm497, %v511, 0.0
    %v517 = vadd.f32 %v515, %v516
    %v518 = vsel %vm497, %v508, 0.0
    %v519 = vadd.f32 %v517, %v518
    %v520 = vsel %vm497, %v512, 0.0
    %v521 = vadd.f32 %v519, %v520
    %522 = vadd.xlane.f32.xlu0 %v521
    %v523 = vpop.xlane.xlu0 %522
    %v524 = vmul.f32 %v506, 0.001953125
    %v525 = vmul.f32 %v523, 0.001953125
    %v526 = vmul.f32 %v524, %v524
    %v527 = vsub.f32 %v525, %v526
    %v530 = vunpack.c.l.s4 839922192
    %v531 = vunpack.c.0.s8 %v530
    %v532 = vlaneseq
    %v533 = vshrl.u32 %v532, 7
    %v534 = vsub.s32 %v531, %v533
    %v535 = vrot.slane %v524, %v534
    %v537 = vsub.f32 %v489, %v535
    %v538 = vsub.f32 %v490, %v535
    %v539 = vadd.f32 %v527, 1e-05
    %v540 = vrsqrt.pop %v539
    %v543 = vunpack.c.l.s4 839922192
    %v544 = vunpack.c.0.s8 %v543
    %v545 = vlaneseq
    %v546 = vshrl.u32 %v545, 7
    %v547 = vsub.s32 %v544, %v546
    %v548 = vrot.slane %v540, %v547
    %v550 = vmul.f32 %v537, %v548
    %v551 = vmul.f32 %v538, %v548
    %v552 = vld [vmem:[%s4] sm:$0xff]
    %v553 = vld [vmem:[%s4 + $0x8] sm:$0xff]
    %v554 = vld [vmem:[%s4 + $0x10] sm:$0xff]
    %v555 = vld [vmem:[%s4 + $0x18] sm:$0xff]
    %v558 = vlaneseq
    %v559 = vshrl.u32 %v558, 7
    %v560 = vsub.s32 0, %v559
    %v561 = vrot.slane %v550, %v560
    %v562 = vlaneseq
    %v563 = vshrl.u32 %v562, 7
    %v564 = vsub.s32 4, %v563
    %v565 = vrot.slane %v550, %v564
    %v566 = vlaneseq
    %v567 = vshrl.u32 %v566, 7
    %v568 = vsub.s32 0, %v567
    %v569 = vrot.slane %v551, %v568
    %v570 = vlaneseq
    %v571 = vshrl.u32 %v570, 7
    %v572 = vsub.s32 4, %v571
    %v573 = vrot.slane %v551, %v572
    %v578 = vlaneseq
    %v579 = vshrl.u32 %v578, 7
    %v580 = vsub.s32 0, %v579
    %v581 = vrot.slane %v561, %v580
    %v582 = vlaneseq
    %v583 = vshrl.u32 %v582, 7
    %v584 = vsub.s32 0, %v583
    %v585 = vrot.slane %v565, %v584
    %v586 = vlaneseq
    %v587 = vshrl.u32 %v586, 7
    %v588 = vsub.s32 0, %v587
    %v589 = vrot.slane %v569, %v588
    %v590 = vlaneseq
    %v591 = vshrl.u32 %v590, 7
    %v592 = vsub.s32 0, %v591
    %v593 = vrot.slane %v573, %v592
    %595 = vset.pattern.permute.xlu0 0
    %596 = vperm.xlu0 %595, %v552
    %v597 = vpop.permute.xlu0 %596
    %v599 = vmul.f32 %v581, %v597
    %v600 = vmul.f32 %v585, %v597
    %v601 = vmul.f32 %v589, %v597
    %v602 = vmul.f32 %v593, %v597
    %v603 = vlaneseq
    %v604 = vshrl.u32 %v603, 7
    %v605 = vsub.s32 1, %v604
    %v606 = vrot.slane %v550, %v605
    %v607 = vlaneseq
    %v608 = vshrl.u32 %v607, 7
    %v609 = vsub.s32 5, %v608
    %v610 = vrot.slane %v550, %v609
    %v611 = vlaneseq
    %v612 = vshrl.u32 %v611, 7
    %v613 = vsub.s32 1, %v612
    %v614 = vrot.slane %v551, %v613
    %v615 = vlaneseq
    %v616 = vshrl.u32 %v615, 7
    %v617 = vsub.s32 5, %v616
    %v618 = vrot.slane %v551, %v617
    %v623 = vlaneseq
    %v624 = vshrl.u32 %v623, 7
    %v625 = vsub.s32 1, %v624
    %v626 = vrot.slane %v606, %v625
    %v627 = vlaneseq
    %v628 = vshrl.u32 %v627, 7
    %v629 = vsub.s32 1, %v628
    %v630 = vrot.slane %v610, %v629
    %v631 = vlaneseq
    %v632 = vshrl.u32 %v631, 7
    %v633 = vsub.s32 1, %v632
    %v634 = vrot.slane %v614, %v633
    %v635 = vlaneseq
    %v636 = vshrl.u32 %v635, 7
    %v637 = vsub.s32 1, %v636
    %v638 = vrot.slane %v618, %v637
    %640 = vset.pattern.permute.xlu0 0
    %641 = vperm.xlu0 %640, %v553
    %v642 = vpop.permute.xlu0 %641
    %v644 = vmul.f32 %v626, %v642
    %v645 = vmul.f32 %v630, %v642
    %v646 = vmul.f32 %v634, %v642
    %v647 = vmul.f32 %v638, %v642
    %v648 = vadd.f32 %v599, %v644
    %v649 = vadd.f32 %v600, %v645
    %v650 = vadd.f32 %v601, %v646
    %v651 = vadd.f32 %v602, %v647
    %v652 = vlaneseq
    %v653 = vshrl.u32 %v652, 7
    %v654 = vsub.s32 2, %v653
    %v655 = vrot.slane %v550, %v654
    %v656 = vlaneseq
    %v657 = vshrl.u32 %v656, 7
    %v658 = vsub.s32 6, %v657
    %v659 = vrot.slane %v550, %v658
    %v660 = vlaneseq
    %v661 = vshrl.u32 %v660, 7
    %v662 = vsub.s32 2, %v661
    %v663 = vrot.slane %v551, %v662
    %v664 = vlaneseq
    %v665 = vshrl.u32 %v664, 7
    %v666 = vsub.s32 6, %v665
    %v667 = vrot.slane %v551, %v666
    %v672 = vlaneseq
    %v673 = vshrl.u32 %v672, 7
    %v674 = vsub.s32 2, %v673
    %v675 = vrot.slane %v655, %v674
    %v676 = vlaneseq
    %v677 = vshrl.u32 %v676, 7
    %v678 = vsub.s32 2, %v677
    %v679 = vrot.slane %v659, %v678
    %v680 = vlaneseq
    %v681 = vshrl.u32 %v680, 7
    %v682 = vsub.s32 2, %v681
    %v683 = vrot.slane %v663, %v682
    %v684 = vlaneseq
    %v685 = vshrl.u32 %v684, 7
    %v686 = vsub.s32 2, %v685
    %v687 = vrot.slane %v667, %v686
    %689 = vset.pattern.permute.xlu0 0
    %690 = vperm.xlu0 %689, %v554
    %v691 = vpop.permute.xlu0 %690
    %v693 = vmul.f32 %v675, %v691
    %v694 = vmul.f32 %v679, %v691
    %v695 = vmul.f32 %v683, %v691
    %v696 = vmul.f32 %v687, %v691
    %v697 = vadd.f32 %v648, %v693
    %v698 = vadd.f32 %v649, %v694
    %v699 = vadd.f32 %v650, %v695
    %v700 = vadd.f32 %v651, %v696
    %v701 = vlaneseq
    %v702 = vshrl.u32 %v701, 7
    %v703 = vsub.s32 3, %v702
    %v704 = vrot.slane %v550, %v703
    %v705 = vlaneseq
    %v706 = vshrl.u32 %v705, 7
    %v707 = vsub.s32 7, %v706
    %v708 = vrot.slane %v550, %v707
    %v709 = vlaneseq
    %v710 = vshrl.u32 %v709, 7
    %v711 = vsub.s32 3, %v710
    %v712 = vrot.slane %v551, %v711
    %v713 = vlaneseq
    %v714 = vshrl.u32 %v713, 7
    %v715 = vsub.s32 7, %v714
    %v716 = vrot.slane %v551, %v715
    %v721 = vlaneseq
    %v722 = vshrl.u32 %v721, 7
    %v723 = vsub.s32 3, %v722
    %v724 = vrot.slane %v704, %v723
    %v725 = vlaneseq
    %v726 = vshrl.u32 %v725, 7
    %v727 = vsub.s32 3, %v726
    %v728 = vrot.slane %v708, %v727
    %v729 = vlaneseq
    %v730 = vshrl.u32 %v729, 7
    %v731 = vsub.s32 3, %v730
    %v732 = vrot.slane %v712, %v731
    %v733 = vlaneseq
    %v734 = vshrl.u32 %v733, 7
    %v735 = vsub.s32 3, %v734
    %v736 = vrot.slane %v716, %v735
    %738 = vset.pattern.permute.xlu0 0
    %739 = vperm.xlu0 %738, %v555
    %v740 = vpop.permute.xlu0 %739
    %v742 = vmul.f32 %v724, %v740
    %v743 = vmul.f32 %v728, %v740
    %v744 = vmul.f32 %v732, %v740
    %v745 = vmul.f32 %v736, %v740
    %v746 = vadd.f32 %v697, %v742
    %v747 = vadd.f32 %v698, %v743
    %v748 = vadd.f32 %v699, %v744
    %v749 = vadd.f32 %v700, %v745
    %v750 = vadd.f32 %v746, %v747
    %v751 = vadd.f32 %v750, %v748
    %v752 = vadd.f32 %v751, %v749
    %753 = vadd.xlane.f32.xlu0 %v752
    %v754 = vpop.xlane.xlu0 %753
    %v755 = vmul.f32 %v746, %v746
    %v756 = vmul.f32 %v747, %v747
    %v757 = vmul.f32 %v748, %v748
    %v758 = vmul.f32 %v749, %v749
    %v759 = vadd.f32 %v755, %v756
    %v760 = vadd.f32 %v759, %v757
    %v761 = vadd.f32 %v760, %v758
    %762 = vadd.xlane.f32.xlu0 %v761
    %v763 = vpop.xlane.xlu0 %762
    %v764 = vmul.f32 %v754, 0.001953125
    %v765 = vmul.f32 %v763, 0.001953125
    %v766 = vmul.f32 %v764, %v764
    %v767 = vsub.f32 %v765, %v766
    %v768 = vsub.f32 %v746, %v764
    %v769 = vsub.f32 %v747, %v764
    %v770 = vsub.f32 %v748, %v764
    %v771 = vsub.f32 %v749, %v764
    %v772 = vadd.f32 %v767, 1e-05
    %v773 = vrsqrt.pop %v772
    %v774 = vmul.f32 %v768, %v773
    %v775 = vmul.f32 %v769, %v773
    %v776 = vmul.f32 %v770, %v773
    %v777 = vmul.f32 %v771, %v773
    %779 = vset.pattern.permute.xlu0 0
    %780 = vperm.xlu0 %779, %v33
    %v781 = vpop.permute.xlu0 %780
    %v783 = vmul.f32 %v774, %v781
    %v784 = vmul.f32 %v775, %v781
    %v785 = vmul.f32 %v776, %v781
    %v786 = vmul.f32 %v777, %v781
    %v787 = vmax.f32 %v783, 0.0
    %v788 = vmax.f32 %v784, 0.0
    %v789 = vmax.f32 %v785, 0.0
    %v790 = vmax.f32 %v786, 0.0
    %v791 = vld [vmem:[%s5] sm:$0xff]
    %v792 = vld [vmem:[%s5 + $0x8] sm:$0xff]
    %v793 = vld [vmem:[%s5 + $0x10] sm:$0xff]
    %v794 = vld [vmem:[%s5 + $0x18] sm:$0xff]
    %v795 = vld [vmem:[%s5 + $0x20] sm:$0xff]
    %v796 = vld [vmem:[%s5 + $0x28] sm:$0xff]
    %v797 = vld [vmem:[%s5 + $0x30] sm:$0xff]
    %v798 = vld [vmem:[%s5 + $0x38] sm:$0xff]
    %v799 = vld [vmem:[%s5 + $0x40] sm:$0xff]
    %801 = vset.pattern.permute.xlu0 0
    %802 = vperm.xlu0 %801, %v795
    %v803 = vpop.permute.xlu0 %802
    %v805 = vmul.f32 %v787, %v803
    %v806 = vmul.f32 %v788, %v803
    %v807 = vmul.f32 %v789, %v803
    %v808 = vmul.f32 %v790, %v803
    %809 = vrot.lane.b32.xlu0 %v787, 17
    %v810 = vpop.permute.xlu0 %809
    %811 = vrot.lane.b32.xlu0 %v788, 17
    %v812 = vpop.permute.xlu0 %811
    %813 = vrot.lane.b32.xlu0 %v789, 17
    %v814 = vpop.permute.xlu0 %813
    %815 = vrot.lane.b32.xlu0 %v790, 17
    %v816 = vpop.permute.xlu0 %815
    %v817 = vsel %vm83, %v814, %v816
    %v818 = vsel %vm83, %v812, %v814
    %v819 = vsel %vm83, %v810, %v812
    %v820 = vsel %vm83, %v816, %v810
    %v821 = vmul.f32 %v820, %v91
    %v822 = vmul.f32 %v819, %v95
    %v823 = vmul.f32 %v818, %v99
    %v824 = vmul.f32 %v817, %v103
    %826 = vset.pattern.permute.xlu0 0
    %827 = vperm.xlu0 %826, %v791
    %v828 = vpop.permute.xlu0 %827
    %v830 = vmul.f32 %v821, %v828
    %v831 = vmul.f32 %v822, %v828
    %v832 = vmul.f32 %v823, %v828
    %v833 = vmul.f32 %v824, %v828
    %v834 = vadd.f32 %v805, %v830
    %v835 = vadd.f32 %v806, %v831
    %v836 = vadd.f32 %v807, %v832
    %v837 = vadd.f32 %v808, %v833
    %838 = vrot.lane.b32.xlu0 %v787, 16
    %v839 = vpop.permute.xlu0 %838
    %840 = vrot.lane.b32.xlu0 %v788, 16
    %v841 = vpop.permute.xlu0 %840
    %842 = vrot.lane.b32.xlu0 %v789, 16
    %v843 = vpop.permute.xlu0 %842
    %844 = vrot.lane.b32.xlu0 %v790, 16
    %v845 = vpop.permute.xlu0 %844
    %v846 = vsel %vm135, %v843, %v845
    %v847 = vsel %vm135, %v841, %v843
    %v848 = vsel %vm135, %v839, %v841
    %v849 = vsel %vm135, %v845, %v839
    %v850 = vmul.f32 %v849, %v143
    %v851 = vmul.f32 %v848, %v147
    %v852 = vmul.f32 %v847, %v151
    %v853 = vmul.f32 %v846, %v155
    %855 = vset.pattern.permute.xlu0 0
    %856 = vperm.xlu0 %855, %v792
    %v857 = vpop.permute.xlu0 %856
    %v859 = vmul.f32 %v850, %v857
    %v860 = vmul.f32 %v851, %v857
    %v861 = vmul.f32 %v852, %v857
    %v862 = vmul.f32 %v853, %v857
    %v863 = vadd.f32 %v834, %v859
    %v864 = vadd.f32 %v835, %v860
    %v865 = vadd.f32 %v836, %v861
    %v866 = vadd.f32 %v837, %v862
    %867 = vrot.lane.b32.xlu0 %v787, 15
    %v868 = vpop.permute.xlu0 %867
    %869 = vrot.lane.b32.xlu0 %v788, 15
    %v870 = vpop.permute.xlu0 %869
    %871 = vrot.lane.b32.xlu0 %v789, 15
    %v872 = vpop.permute.xlu0 %871
    %873 = vrot.lane.b32.xlu0 %v790, 15
    %v874 = vpop.permute.xlu0 %873
    %v875 = vsel %vm187, %v872, %v874
    %v876 = vsel %vm187, %v870, %v872
    %v877 = vsel %vm187, %v868, %v870
    %v878 = vsel %vm187, %v874, %v868
    %v879 = vmul.f32 %v878, %v195
    %v880 = vmul.f32 %v877, %v199
    %v881 = vmul.f32 %v876, %v203
    %v882 = vmul.f32 %v875, %v207
    %884 = vset.pattern.permute.xlu0 0
    %885 = vperm.xlu0 %884, %v793
    %v886 = vpop.permute.xlu0 %885
    %v888 = vmul.f32 %v879, %v886
    %v889 = vmul.f32 %v880, %v886
    %v890 = vmul.f32 %v881, %v886
    %v891 = vmul.f32 %v882, %v886
    %v892 = vadd.f32 %v863, %v888
    %v893 = vadd.f32 %v864, %v889
    %v894 = vadd.f32 %v865, %v890
    %v895 = vadd.f32 %v866, %v891
    %896 = vrot.lane.b32.xlu0 %v787, 1
    %v897 = vpop.permute.xlu0 %896
    %898 = vrot.lane.b32.xlu0 %v788, 1
    %v899 = vpop.permute.xlu0 %898
    %900 = vrot.lane.b32.xlu0 %v789, 1
    %v901 = vpop.permute.xlu0 %900
    %902 = vrot.lane.b32.xlu0 %v790, 1
    %v903 = vpop.permute.xlu0 %902
    %v904 = vsel %vm239, %v901, %v903
    %v905 = vsel %vm239, %v899, %v901
    %v906 = vsel %vm239, %v897, %v899
    %v907 = vsel %vm239, %v903, %v897
    %v908 = vmul.f32 %v907, %v247
    %v909 = vmul.f32 %v906, %v251
    %v910 = vmul.f32 %v905, %v255
    %v911 = vmul.f32 %v904, %v259
    %913 = vset.pattern.permute.xlu0 0
    %914 = vperm.xlu0 %913, %v794
    %v915 = vpop.permute.xlu0 %914
    %v917 = vmul.f32 %v908, %v915
    %v918 = vmul.f32 %v909, %v915
    %v919 = vmul.f32 %v910, %v915
    %v920 = vmul.f32 %v911, %v915
    %v921 = vadd.f32 %v892, %v917
    %v922 = vadd.f32 %v893, %v918
    %v923 = vadd.f32 %v894, %v919
    %v924 = vadd.f32 %v895, %v920
    %925 = vrot.lane.b32.xlu0 %v787, 127
    %v926 = vpop.permute.xlu0 %925
    %927 = vrot.lane.b32.xlu0 %v788, 127
    %v928 = vpop.permute.xlu0 %927
    %929 = vrot.lane.b32.xlu0 %v789, 127
    %v930 = vpop.permute.xlu0 %929
    %931 = vrot.lane.b32.xlu0 %v790, 127
    %v932 = vpop.permute.xlu0 %931
    %v933 = vsel %vm291, %v930, %v932
    %v934 = vsel %vm291, %v928, %v930
    %v935 = vsel %vm291, %v926, %v928
    %v936 = vsel %vm291, %v932, %v926
    %v937 = vmul.f32 %v935, %v299
    %v938 = vmul.f32 %v934, %v303
    %v939 = vmul.f32 %v933, %v307
    %v940 = vmul.f32 %v936, %v311
    %942 = vset.pattern.permute.xlu0 0
    %943 = vperm.xlu0 %942, %v796
    %v944 = vpop.permute.xlu0 %943
    %v946 = vmul.f32 %v937, %v944
    %v947 = vmul.f32 %v938, %v944
    %v948 = vmul.f32 %v939, %v944
    %v949 = vmul.f32 %v940, %v944
    %v950 = vadd.f32 %v921, %v946
    %v951 = vadd.f32 %v922, %v947
    %v952 = vadd.f32 %v923, %v948
    %v953 = vadd.f32 %v924, %v949
    %954 = vrot.lane.b32.xlu0 %v787, 113
    %v955 = vpop.permute.xlu0 %954
    %956 = vrot.lane.b32.xlu0 %v788, 113
    %v957 = vpop.permute.xlu0 %956
    %958 = vrot.lane.b32.xlu0 %v789, 113
    %v959 = vpop.permute.xlu0 %958
    %960 = vrot.lane.b32.xlu0 %v790, 113
    %v961 = vpop.permute.xlu0 %960
    %v962 = vsel %vm343, %v959, %v961
    %v963 = vsel %vm343, %v957, %v959
    %v964 = vsel %vm343, %v955, %v957
    %v965 = vsel %vm343, %v961, %v955
    %v966 = vmul.f32 %v964, %v351
    %v967 = vmul.f32 %v963, %v355
    %v968 = vmul.f32 %v962, %v359
    %v969 = vmul.f32 %v965, %v363
    %971 = vset.pattern.permute.xlu0 0
    %972 = vperm.xlu0 %971, %v797
    %v973 = vpop.permute.xlu0 %972
    %v975 = vmul.f32 %v966, %v973
    %v976 = vmul.f32 %v967, %v973
    %v977 = vmul.f32 %v968, %v973
    %v978 = vmul.f32 %v969, %v973
    %v979 = vadd.f32 %v950, %v975
    %v980 = vadd.f32 %v951, %v976
    %v981 = vadd.f32 %v952, %v977
    %v982 = vadd.f32 %v953, %v978
    %983 = vrot.lane.b32.xlu0 %v787, 112
    %v984 = vpop.permute.xlu0 %983
    %985 = vrot.lane.b32.xlu0 %v788, 112
    %v986 = vpop.permute.xlu0 %985
    %987 = vrot.lane.b32.xlu0 %v789, 112
    %v988 = vpop.permute.xlu0 %987
    %989 = vrot.lane.b32.xlu0 %v790, 112
    %v990 = vpop.permute.xlu0 %989
    %v991 = vsel %vm395, %v988, %v990
    %v992 = vsel %vm395, %v986, %v988
    %v993 = vsel %vm395, %v984, %v986
    %v994 = vsel %vm395, %v990, %v984
    %v995 = vmul.f32 %v993, %v403
    %v996 = vmul.f32 %v992, %v407
    %v997 = vmul.f32 %v991, %v411
    %v998 = vmul.f32 %v994, %v415
    %1000 = vset.pattern.permute.xlu0 0
    %1001 = vperm.xlu0 %1000, %v798
    %v1002 = vpop.permute.xlu0 %1001
    %v1004 = vmul.f32 %v995, %v1002
    %v1005 = vmul.f32 %v996, %v1002
    %v1006 = vmul.f32 %v997, %v1002
    %v1007 = vmul.f32 %v998, %v1002
    %v1008 = vadd.f32 %v979, %v1004
    %v1009 = vadd.f32 %v980, %v1005
    %v1010 = vadd.f32 %v981, %v1006
    %v1011 = vadd.f32 %v982, %v1007
    %1012 = vrot.lane.b32.xlu0 %v787, 111
    %v1013 = vpop.permute.xlu0 %1012
    %1014 = vrot.lane.b32.xlu0 %v788, 111
    %v1015 = vpop.permute.xlu0 %1014
    %1016 = vrot.lane.b32.xlu0 %v789, 111
    %v1017 = vpop.permute.xlu0 %1016
    %1018 = vrot.lane.b32.xlu0 %v790, 111
    %v1019 = vpop.permute.xlu0 %1018
    %v1020 = vsel %vm447, %v1017, %v1019
    %v1021 = vsel %vm447, %v1015, %v1017
    %v1022 = vsel %vm447, %v1013, %v1015
    %v1023 = vsel %vm447, %v1019, %v1013
    %v1024 = vmul.f32 %v1022, %v455
    %v1025 = vmul.f32 %v1021, %v459
    %v1026 = vmul.f32 %v1020, %v463
    %v1027 = vmul.f32 %v1023, %v467
    %1029 = vset.pattern.permute.xlu0 0
    %1030 = vperm.xlu0 %1029, %v799
    %v1031 = vpop.permute.xlu0 %1030
    %v1033 = vmul.f32 %v1024, %v1031
    %v1034 = vmul.f32 %v1025, %v1031
    %v1035 = vmul.f32 %v1026, %v1031
    %v1036 = vmul.f32 %v1027, %v1031
    %v1037 = vadd.f32 %v1008, %v1033
    %v1038 = vadd.f32 %v1009, %v1034
    %v1039 = vadd.f32 %v1010, %v1035
    %v1040 = vadd.f32 %v1011, %v1036
    %v1041 = vadd.f32 %v1037, %v1038
    %v1042 = vadd.f32 %v1041, %v1039
    %v1043 = vadd.f32 %v1042, %v1040
    %1044 = vadd.xlane.f32.xlu0 %v1043
    %v1045 = vpop.xlane.xlu0 %1044
    %v1046 = vmul.f32 %v1037, %v1037
    %v1047 = vmul.f32 %v1038, %v1038
    %v1048 = vmul.f32 %v1039, %v1039
    %v1049 = vmul.f32 %v1040, %v1040
    %v1050 = vadd.f32 %v1046, %v1047
    %v1051 = vadd.f32 %v1050, %v1048
    %v1052 = vadd.f32 %v1051, %v1049
    %1053 = vadd.xlane.f32.xlu0 %v1052
    %v1054 = vpop.xlane.xlu0 %1053
    %v1055 = vmul.f32 %v1045, 0.001953125
    %v1056 = vmul.f32 %v1054, 0.001953125
    %v1057 = vmul.f32 %v1055, %v1055
    %v1058 = vsub.f32 %v1056, %v1057
    %v1059 = vsub.f32 %v1037, %v1055
    %v1060 = vsub.f32 %v1038, %v1055
    %v1061 = vsub.f32 %v1039, %v1055
    %v1062 = vsub.f32 %v1040, %v1055
    %v1063 = vadd.f32 %v1058, 1e-05
    %v1064 = vrsqrt.pop %v1063
    %v1065 = vmul.f32 %v1059, %v1064
    %v1066 = vmul.f32 %v1060, %v1064
    %v1067 = vmul.f32 %v1061, %v1064
    %v1068 = vmul.f32 %v1062, %v1064
    %v1069 = vld [vmem:[%s6] sm:$0xff]
    %v1070 = vld [vmem:[%s6 + $0x8] sm:$0xff]
    %v1071 = vld [vmem:[%s6 + $0x10] sm:$0xff]
    %v1072 = vld [vmem:[%s6 + $0x18] sm:$0xff]
    %v1073 = vld [vmem:[%s6 + $0x20] sm:$0xff]
    %v1074 = vld [vmem:[%s6 + $0x28] sm:$0xff]
    %v1075 = vld [vmem:[%s6 + $0x30] sm:$0xff]
    %v1076 = vld [vmem:[%s6 + $0x38] sm:$0xff]
    %v1077 = vlaneseq
    %v1078 = vshrl.u32 %v1077, 7
    %v1079 = vsub.s32 0, %v1078
    %v1080 = vrot.slane %v1065, %v1079
    %v1081 = vlaneseq
    %v1082 = vshrl.u32 %v1081, 7
    %v1083 = vsub.s32 0, %v1082
    %v1084 = vrot.slane %v1066, %v1083
    %v1085 = vlaneseq
    %v1086 = vshrl.u32 %v1085, 7
    %v1087 = vsub.s32 0, %v1086
    %v1088 = vrot.slane %v1067, %v1087
    %v1089 = vlaneseq
    %v1090 = vshrl.u32 %v1089, 7
    %v1091 = vsub.s32 0, %v1090
    %v1092 = vrot.slane %v1068, %v1091
    %1094 = vset.pattern.permute.xlu0 0
    %1095 = vperm.xlu0 %1094, %v1069
    %v1096 = vpop.permute.xlu0 %1095
    %v1098 = vmul.f32 %v1080, %v1096
    %v1099 = vmul.f32 %v1084, %v1096
    %v1100 = vmul.f32 %v1088, %v1096
    %v1101 = vmul.f32 %v1092, %v1096
    %v1102 = vlaneseq
    %v1103 = vshrl.u32 %v1102, 7
    %v1104 = vsub.s32 1, %v1103
    %v1105 = vrot.slane %v1065, %v1104
    %v1106 = vlaneseq
    %v1107 = vshrl.u32 %v1106, 7
    %v1108 = vsub.s32 1, %v1107
    %v1109 = vrot.slane %v1066, %v1108
    %v1110 = vlaneseq
    %v1111 = vshrl.u32 %v1110, 7
    %v1112 = vsub.s32 1, %v1111
    %v1113 = vrot.slane %v1067, %v1112
    %v1114 = vlaneseq
    %v1115 = vshrl.u32 %v1114, 7
    %v1116 = vsub.s32 1, %v1115
    %v1117 = vrot.slane %v1068, %v1116
    %1119 = vset.pattern.permute.xlu0 0
    %1120 = vperm.xlu0 %1119, %v1070
    %v1121 = vpop.permute.xlu0 %1120
    %v1123 = vmul.f32 %v1105, %v1121
    %v1124 = vmul.f32 %v1109, %v1121
    %v1125 = vmul.f32 %v1113, %v1121
    %v1126 = vmul.f32 %v1117, %v1121
    %v1127 = vadd.f32 %v1098, %v1123
    %v1128 = vadd.f32 %v1099, %v1124
    %v1129 = vadd.f32 %v1100, %v1125
    %v1130 = vadd.f32 %v1101, %v1126
    %v1131 = vlaneseq
    %v1132 = vshrl.u32 %v1131, 7
    %v1133 = vsub.s32 2, %v1132
    %v1134 = vrot.slane %v1065, %v1133
    %v1135 = vlaneseq
    %v1136 = vshrl.u32 %v1135, 7
    %v1137 = vsub.s32 2, %v1136
    %v1138 = vrot.slane %v1066, %v1137
    %v1139 = vlaneseq
    %v1140 = vshrl.u32 %v1139, 7
    %v1141 = vsub.s32 2, %v1140
    %v1142 = vrot.slane %v1067, %v1141
    %v1143 = vlaneseq
    %v1144 = vshrl.u32 %v1143, 7
    %v1145 = vsub.s32 2, %v1144
    %v1146 = vrot.slane %v1068, %v1145
    %1148 = vset.pattern.permute.xlu0 0
    %1149 = vperm.xlu0 %1148, %v1071
    %v1150 = vpop.permute.xlu0 %1149
    %v1152 = vmul.f32 %v1134, %v1150
    %v1153 = vmul.f32 %v1138, %v1150
    %v1154 = vmul.f32 %v1142, %v1150
    %v1155 = vmul.f32 %v1146, %v1150
    %v1156 = vadd.f32 %v1127, %v1152
    %v1157 = vadd.f32 %v1128, %v1153
    %v1158 = vadd.f32 %v1129, %v1154
    %v1159 = vadd.f32 %v1130, %v1155
    %v1160 = vlaneseq
    %v1161 = vshrl.u32 %v1160, 7
    %v1162 = vsub.s32 3, %v1161
    %v1163 = vrot.slane %v1065, %v1162
    %v1164 = vlaneseq
    %v1165 = vshrl.u32 %v1164, 7
    %v1166 = vsub.s32 3, %v1165
    %v1167 = vrot.slane %v1066, %v1166
    %v1168 = vlaneseq
    %v1169 = vshrl.u32 %v1168, 7
    %v1170 = vsub.s32 3, %v1169
    %v1171 = vrot.slane %v1067, %v1170
    %v1172 = vlaneseq
    %v1173 = vshrl.u32 %v1172, 7
    %v1174 = vsub.s32 3, %v1173
    %v1175 = vrot.slane %v1068, %v1174
    %1177 = vset.pattern.permute.xlu0 0
    %1178 = vperm.xlu0 %1177, %v1072
    %v1179 = vpop.permute.xlu0 %1178
    %v1181 = vmul.f32 %v1163, %v1179
    %v1182 = vmul.f32 %v1167, %v1179
    %v1183 = vmul.f32 %v1171, %v1179
    %v1184 = vmul.f32 %v1175, %v1179
    %v1185 = vadd.f32 %v1156, %v1181
    %v1186 = vadd.f32 %v1157, %v1182
    %v1187 = vadd.f32 %v1158, %v1183
    %v1188 = vadd.f32 %v1159, %v1184
    %v1189 = vlaneseq
    %v1190 = vshrl.u32 %v1189, 7
    %v1191 = vsub.s32 4, %v1190
    %v1192 = vrot.slane %v1065, %v1191
    %v1193 = vlaneseq
    %v1194 = vshrl.u32 %v1193, 7
    %v1195 = vsub.s32 4, %v1194
    %v1196 = vrot.slane %v1066, %v1195
    %v1197 = vlaneseq
    %v1198 = vshrl.u32 %v1197, 7
    %v1199 = vsub.s32 4, %v1198
    %v1200 = vrot.slane %v1067, %v1199
    %v1201 = vlaneseq
    %v1202 = vshrl.u32 %v1201, 7
    %v1203 = vsub.s32 4, %v1202
    %v1204 = vrot.slane %v1068, %v1203
    %1206 = vset.pattern.permute.xlu0 0
    %1207 = vperm.xlu0 %1206, %v1073
    %v1208 = vpop.permute.xlu0 %1207
    %v1210 = vmul.f32 %v1192, %v1208
    %v1211 = vmul.f32 %v1196, %v1208
    %v1212 = vmul.f32 %v1200, %v1208
    %v1213 = vmul.f32 %v1204, %v1208
    %v1214 = vadd.f32 %v1185, %v1210
    %v1215 = vadd.f32 %v1186, %v1211
    %v1216 = vadd.f32 %v1187, %v1212
    %v1217 = vadd.f32 %v1188, %v1213
    %v1218 = vlaneseq
    %v1219 = vshrl.u32 %v1218, 7
    %v1220 = vsub.s32 5, %v1219
    %v1221 = vrot.slane %v1065, %v1220
    %v1222 = vlaneseq
    %v1223 = vshrl.u32 %v1222, 7
    %v1224 = vsub.s32 5, %v1223
    %v1225 = vrot.slane %v1066, %v1224
    %v1226 = vlaneseq
    %v1227 = vshrl.u32 %v1226, 7
    %v1228 = vsub.s32 5, %v1227
    %v1229 = vrot.slane %v1067, %v1228
    %v1230 = vlaneseq
    %v1231 = vshrl.u32 %v1230, 7
    %v1232 = vsub.s32 5, %v1231
    %v1233 = vrot.slane %v1068, %v1232
    %1235 = vset.pattern.permute.xlu0 0
    %1236 = vperm.xlu0 %1235, %v1074
    %v1237 = vpop.permute.xlu0 %1236
    %v1239 = vmul.f32 %v1221, %v1237
    %v1240 = vmul.f32 %v1225, %v1237
    %v1241 = vmul.f32 %v1229, %v1237
    %v1242 = vmul.f32 %v1233, %v1237
    %v1243 = vadd.f32 %v1214, %v1239
    %v1244 = vadd.f32 %v1215, %v1240
    %v1245 = vadd.f32 %v1216, %v1241
    %v1246 = vadd.f32 %v1217, %v1242
    %v1247 = vlaneseq
    %v1248 = vshrl.u32 %v1247, 7
    %v1249 = vsub.s32 6, %v1248
    %v1250 = vrot.slane %v1065, %v1249
    %v1251 = vlaneseq
    %v1252 = vshrl.u32 %v1251, 7
    %v1253 = vsub.s32 6, %v1252
    %v1254 = vrot.slane %v1066, %v1253
    %v1255 = vlaneseq
    %v1256 = vshrl.u32 %v1255, 7
    %v1257 = vsub.s32 6, %v1256
    %v1258 = vrot.slane %v1067, %v1257
    %v1259 = vlaneseq
    %v1260 = vshrl.u32 %v1259, 7
    %v1261 = vsub.s32 6, %v1260
    %v1262 = vrot.slane %v1068, %v1261
    %1264 = vset.pattern.permute.xlu0 0
    %1265 = vperm.xlu0 %1264, %v1075
    %v1266 = vpop.permute.xlu0 %1265
    %v1268 = vmul.f32 %v1250, %v1266
    %v1269 = vmul.f32 %v1254, %v1266
    %v1270 = vmul.f32 %v1258, %v1266
    %v1271 = vmul.f32 %v1262, %v1266
    %v1272 = vadd.f32 %v1243, %v1268
    %v1273 = vadd.f32 %v1244, %v1269
    %v1274 = vadd.f32 %v1245, %v1270
    %v1275 = vadd.f32 %v1246, %v1271
    %v1276 = vlaneseq
    %v1277 = vshrl.u32 %v1276, 7
    %v1278 = vsub.s32 7, %v1277
    %v1279 = vrot.slane %v1065, %v1278
    %v1280 = vlaneseq
    %v1281 = vshrl.u32 %v1280, 7
    %v1282 = vsub.s32 7, %v1281
    %v1283 = vrot.slane %v1066, %v1282
    %v1284 = vlaneseq
    %v1285 = vshrl.u32 %v1284, 7
    %v1286 = vsub.s32 7, %v1285
    %v1287 = vrot.slane %v1067, %v1286
    %v1288 = vlaneseq
    %v1289 = vshrl.u32 %v1288, 7
    %v1290 = vsub.s32 7, %v1289
    %v1291 = vrot.slane %v1068, %v1290
    %1293 = vset.pattern.permute.xlu0 0
    %1294 = vperm.xlu0 %1293, %v1076
    %v1295 = vpop.permute.xlu0 %1294
    %v1297 = vmul.f32 %v1279, %v1295
    %v1298 = vmul.f32 %v1283, %v1295
    %v1299 = vmul.f32 %v1287, %v1295
    %v1300 = vmul.f32 %v1291, %v1295
    %v1301 = vadd.f32 %v1272, %v1297
    %v1302 = vadd.f32 %v1273, %v1298
    %v1303 = vadd.f32 %v1274, %v1299
    %v1304 = vadd.f32 %v1275, %v1300
    %v1305 = vadd.f32 %v1301, %v1302
    %v1306 = vadd.f32 %v1305, %v1303
    %v1307 = vadd.f32 %v1306, %v1304
    %1308 = vadd.xlane.f32.xlu0 %v1307
    %v1309 = vpop.xlane.xlu0 %1308
    %v1310 = vmul.f32 %v1301, %v1301
    %v1311 = vmul.f32 %v1302, %v1302
    %v1312 = vmul.f32 %v1303, %v1303
    %v1313 = vmul.f32 %v1304, %v1304
    %v1314 = vadd.f32 %v1310, %v1311
    %v1315 = vadd.f32 %v1314, %v1312
    %v1316 = vadd.f32 %v1315, %v1313
    %1317 = vadd.xlane.f32.xlu0 %v1316
    %v1318 = vpop.xlane.xlu0 %1317
    %v1319 = vmul.f32 %v1309, 0.001953125
    %v1320 = vmul.f32 %v1318, 0.001953125
    %v1321 = vmul.f32 %v1319, %v1319
    %v1322 = vsub.f32 %v1320, %v1321
    %v1323 = vsub.f32 %v1301, %v1319
    %v1324 = vsub.f32 %v1302, %v1319
    %v1325 = vsub.f32 %v1303, %v1319
    %v1326 = vsub.f32 %v1304, %v1319
    %v1327 = vadd.f32 %v1322, 1e-05
    %v1328 = vrsqrt.pop %v1327
    %v1329 = vmul.f32 %v1323, %v1328
    %v1330 = vmul.f32 %v1324, %v1328
    %v1331 = vmul.f32 %v1325, %v1328
    %v1332 = vmul.f32 %v1326, %v1328
    %v1333 = vmul.f32 %v1329, %v781
    %v1334 = vmul.f32 %v1330, %v781
    %v1335 = vmul.f32 %v1331, %v781
    %v1336 = vmul.f32 %v1332, %v781
    %v1337 = vmax.f32 %v1333, 0.0
    %v1338 = vmax.f32 %v1334, 0.0
    %v1339 = vmax.f32 %v1335, 0.0
    %v1340 = vmax.f32 %v1336, 0.0
    %v1341 = vld [vmem:[%s7] sm:$0xff]
    %v1342 = vld [vmem:[%s7 + $0x8] sm:$0xff]
    %v1343 = vld [vmem:[%s7 + $0x10] sm:$0xff]
    %v1344 = vld [vmem:[%s7 + $0x18] sm:$0xff]
    %v1345 = vld [vmem:[%s7 + $0x20] sm:$0xff]
    %v1346 = vld [vmem:[%s7 + $0x28] sm:$0xff]
    %v1347 = vld [vmem:[%s7 + $0x30] sm:$0xff]
    %v1348 = vld [vmem:[%s7 + $0x38] sm:$0xff]
    %v1349 = vld [vmem:[%s7 + $0x40] sm:$0xff]
    %1351 = vset.pattern.permute.xlu0 0
    %1352 = vperm.xlu0 %1351, %v1345
    %v1353 = vpop.permute.xlu0 %1352
    %v1355 = vmul.f32 %v1337, %v1353
    %v1356 = vmul.f32 %v1338, %v1353
    %v1357 = vmul.f32 %v1339, %v1353
    %v1358 = vmul.f32 %v1340, %v1353
    %1359 = vrot.lane.b32.xlu0 %v1337, 17
    %v1360 = vpop.permute.xlu0 %1359
    %1361 = vrot.lane.b32.xlu0 %v1338, 17
    %v1362 = vpop.permute.xlu0 %1361
    %1363 = vrot.lane.b32.xlu0 %v1339, 17
    %v1364 = vpop.permute.xlu0 %1363
    %1365 = vrot.lane.b32.xlu0 %v1340, 17
    %v1366 = vpop.permute.xlu0 %1365
    %v1367 = vsel %vm83, %v1364, %v1366
    %v1368 = vsel %vm83, %v1362, %v1364
    %v1369 = vsel %vm83, %v1360, %v1362
    %v1370 = vsel %vm83, %v1366, %v1360
    %v1371 = vmul.f32 %v1370, %v91
    %v1372 = vmul.f32 %v1369, %v95
    %v1373 = vmul.f32 %v1368, %v99
    %v1374 = vmul.f32 %v1367, %v103
    %1376 = vset.pattern.permute.xlu0 0
    %1377 = vperm.xlu0 %1376, %v1341
    %v1378 = vpop.permute.xlu0 %1377
    %v1380 = vmul.f32 %v1371, %v1378
    %v1381 = vmul.f32 %v1372, %v1378
    %v1382 = vmul.f32 %v1373, %v1378
    %v1383 = vmul.f32 %v1374, %v1378
    %v1384 = vadd.f32 %v1355, %v1380
    %v1385 = vadd.f32 %v1356, %v1381
    %v1386 = vadd.f32 %v1357, %v1382
    %v1387 = vadd.f32 %v1358, %v1383
    %1388 = vrot.lane.b32.xlu0 %v1337, 16
    %v1389 = vpop.permute.xlu0 %1388
    %1390 = vrot.lane.b32.xlu0 %v1338, 16
    %v1391 = vpop.permute.xlu0 %1390
    %1392 = vrot.lane.b32.xlu0 %v1339, 16
    %v1393 = vpop.permute.xlu0 %1392
    %1394 = vrot.lane.b32.xlu0 %v1340, 16
    %v1395 = vpop.permute.xlu0 %1394
    %v1396 = vsel %vm135, %v1393, %v1395
    %v1397 = vsel %vm135, %v1391, %v1393
    %v1398 = vsel %vm135, %v1389, %v1391
    %v1399 = vsel %vm135, %v1395, %v1389
    %v1400 = vmul.f32 %v1399, %v143
    %v1401 = vmul.f32 %v1398, %v147
    %v1402 = vmul.f32 %v1397, %v151
    %v1403 = vmul.f32 %v1396, %v155
    %1405 = vset.pattern.permute.xlu0 0
    %1406 = vperm.xlu0 %1405, %v1342
    %v1407 = vpop.permute.xlu0 %1406
    %v1409 = vmul.f32 %v1400, %v1407
    %v1410 = vmul.f32 %v1401, %v1407
    %v1411 = vmul.f32 %v1402, %v1407
    %v1412 = vmul.f32 %v1403, %v1407
    %v1413 = vadd.f32 %v1384, %v1409
    %v1414 = vadd.f32 %v1385, %v1410
    %v1415 = vadd.f32 %v1386, %v1411
    %v1416 = vadd.f32 %v1387, %v1412
    %1417 = vrot.lane.b32.xlu0 %v1337, 15
    %v1418 = vpop.permute.xlu0 %1417
    %1419 = vrot.lane.b32.xlu0 %v1338, 15
    %v1420 = vpop.permute.xlu0 %1419
    %1421 = vrot.lane.b32.xlu0 %v1339, 15
    %v1422 = vpop.permute.xlu0 %1421
    %1423 = vrot.lane.b32.xlu0 %v1340, 15
    %v1424 = vpop.permute.xlu0 %1423
    %v1425 = vsel %vm187, %v1422, %v1424
    %v1426 = vsel %vm187, %v1420, %v1422
    %v1427 = vsel %vm187, %v1418, %v1420
    %v1428 = vsel %vm187, %v1424, %v1418
    %v1429 = vmul.f32 %v1428, %v195
    %v1430 = vmul.f32 %v1427, %v199
    %v1431 = vmul.f32 %v1426, %v203
    %v1432 = vmul.f32 %v1425, %v207
    %1434 = vset.pattern.permute.xlu0 0
    %1435 = vperm.xlu0 %1434, %v1343
    %v1436 = vpop.permute.xlu0 %1435
    %v1438 = vmul.f32 %v1429, %v1436
    %v1439 = vmul.f32 %v1430, %v1436
    %v1440 = vmul.f32 %v1431, %v1436
    %v1441 = vmul.f32 %v1432, %v1436
    %v1442 = vadd.f32 %v1413, %v1438
    %v1443 = vadd.f32 %v1414, %v1439
    %v1444 = vadd.f32 %v1415, %v1440
    %v1445 = vadd.f32 %v1416, %v1441
    %1446 = vrot.lane.b32.xlu0 %v1337, 1
    %v1447 = vpop.permute.xlu0 %1446
    %1448 = vrot.lane.b32.xlu0 %v1338, 1
    %v1449 = vpop.permute.xlu0 %1448
    %1450 = vrot.lane.b32.xlu0 %v1339, 1
    %v1451 = vpop.permute.xlu0 %1450
    %1452 = vrot.lane.b32.xlu0 %v1340, 1
    %v1453 = vpop.permute.xlu0 %1452
    %v1454 = vsel %vm239, %v1451, %v1453
    %v1455 = vsel %vm239, %v1449, %v1451
    %v1456 = vsel %vm239, %v1447, %v1449
    %v1457 = vsel %vm239, %v1453, %v1447
    %v1458 = vmul.f32 %v1457, %v247
    %v1459 = vmul.f32 %v1456, %v251
    %v1460 = vmul.f32 %v1455, %v255
    %v1461 = vmul.f32 %v1454, %v259
    %1463 = vset.pattern.permute.xlu0 0
    %1464 = vperm.xlu0 %1463, %v1344
    %v1465 = vpop.permute.xlu0 %1464
    %v1467 = vmul.f32 %v1458, %v1465
    %v1468 = vmul.f32 %v1459, %v1465
    %v1469 = vmul.f32 %v1460, %v1465
    %v1470 = vmul.f32 %v1461, %v1465
    %v1471 = vadd.f32 %v1442, %v1467
    %v1472 = vadd.f32 %v1443, %v1468
    %v1473 = vadd.f32 %v1444, %v1469
    %v1474 = vadd.f32 %v1445, %v1470
    %1475 = vrot.lane.b32.xlu0 %v1337, 127
    %v1476 = vpop.permute.xlu0 %1475
    %1477 = vrot.lane.b32.xlu0 %v1338, 127
    %v1478 = vpop.permute.xlu0 %1477
    %1479 = vrot.lane.b32.xlu0 %v1339, 127
    %v1480 = vpop.permute.xlu0 %1479
    %1481 = vrot.lane.b32.xlu0 %v1340, 127
    %v1482 = vpop.permute.xlu0 %1481
    %v1483 = vsel %vm291, %v1480, %v1482
    %v1484 = vsel %vm291, %v1478, %v1480
    %v1485 = vsel %vm291, %v1476, %v1478
    %v1486 = vsel %vm291, %v1482, %v1476
    %v1487 = vmul.f32 %v1485, %v299
    %v1488 = vmul.f32 %v1484, %v303
    %v1489 = vmul.f32 %v1483, %v307
    %v1490 = vmul.f32 %v1486, %v311
    %1492 = vset.pattern.permute.xlu0 0
    %1493 = vperm.xlu0 %1492, %v1346
    %v1494 = vpop.permute.xlu0 %1493
    %v1496 = vmul.f32 %v1487, %v1494
    %v1497 = vmul.f32 %v1488, %v1494
    %v1498 = vmul.f32 %v1489, %v1494
    %v1499 = vmul.f32 %v1490, %v1494
    %v1500 = vadd.f32 %v1471, %v1496
    %v1501 = vadd.f32 %v1472, %v1497
    %v1502 = vadd.f32 %v1473, %v1498
    %v1503 = vadd.f32 %v1474, %v1499
    %1504 = vrot.lane.b32.xlu0 %v1337, 113
    %v1505 = vpop.permute.xlu0 %1504
    %1506 = vrot.lane.b32.xlu0 %v1338, 113
    %v1507 = vpop.permute.xlu0 %1506
    %1508 = vrot.lane.b32.xlu0 %v1339, 113
    %v1509 = vpop.permute.xlu0 %1508
    %1510 = vrot.lane.b32.xlu0 %v1340, 113
    %v1511 = vpop.permute.xlu0 %1510
    %v1512 = vsel %vm343, %v1509, %v1511
    %v1513 = vsel %vm343, %v1507, %v1509
    %v1514 = vsel %vm343, %v1505, %v1507
    %v1515 = vsel %vm343, %v1511, %v1505
    %v1516 = vmul.f32 %v1514, %v351
    %v1517 = vmul.f32 %v1513, %v355
    %v1518 = vmul.f32 %v1512, %v359
    %v1519 = vmul.f32 %v1515, %v363
    %1521 = vset.pattern.permute.xlu0 0
    %1522 = vperm.xlu0 %1521, %v1347
    %v1523 = vpop.permute.xlu0 %1522
    %v1525 = vmul.f32 %v1516, %v1523
    %v1526 = vmul.f32 %v1517, %v1523
    %v1527 = vmul.f32 %v1518, %v1523
    %v1528 = vmul.f32 %v1519, %v1523
    %v1529 = vadd.f32 %v1500, %v1525
    %v1530 = vadd.f32 %v1501, %v1526
    %v1531 = vadd.f32 %v1502, %v1527
    %v1532 = vadd.f32 %v1503, %v1528
    %1533 = vrot.lane.b32.xlu0 %v1337, 112
    %v1534 = vpop.permute.xlu0 %1533
    %1535 = vrot.lane.b32.xlu0 %v1338, 112
    %v1536 = vpop.permute.xlu0 %1535
    %1537 = vrot.lane.b32.xlu0 %v1339, 112
    %v1538 = vpop.permute.xlu0 %1537
    %1539 = vrot.lane.b32.xlu0 %v1340, 112
    %v1540 = vpop.permute.xlu0 %1539
    %v1541 = vsel %vm395, %v1538, %v1540
    %v1542 = vsel %vm395, %v1536, %v1538
    %v1543 = vsel %vm395, %v1534, %v1536
    %v1544 = vsel %vm395, %v1540, %v1534
    %v1545 = vmul.f32 %v1543, %v403
    %v1546 = vmul.f32 %v1542, %v407
    %v1547 = vmul.f32 %v1541, %v411
    %v1548 = vmul.f32 %v1544, %v415
    %1550 = vset.pattern.permute.xlu0 0
    %1551 = vperm.xlu0 %1550, %v1348
    %v1552 = vpop.permute.xlu0 %1551
    %v1554 = vmul.f32 %v1545, %v1552
    %v1555 = vmul.f32 %v1546, %v1552
    %v1556 = vmul.f32 %v1547, %v1552
    %v1557 = vmul.f32 %v1548, %v1552
    %v1558 = vadd.f32 %v1529, %v1554
    %v1559 = vadd.f32 %v1530, %v1555
    %v1560 = vadd.f32 %v1531, %v1556
    %v1561 = vadd.f32 %v1532, %v1557
    %1562 = vrot.lane.b32.xlu0 %v1337, 111
    %v1563 = vpop.permute.xlu0 %1562
    %1564 = vrot.lane.b32.xlu0 %v1338, 111
    %v1565 = vpop.permute.xlu0 %1564
    %1566 = vrot.lane.b32.xlu0 %v1339, 111
    %v1567 = vpop.permute.xlu0 %1566
    %1568 = vrot.lane.b32.xlu0 %v1340, 111
    %v1569 = vpop.permute.xlu0 %1568
    %v1570 = vsel %vm447, %v1567, %v1569
    %v1571 = vsel %vm447, %v1565, %v1567
    %v1572 = vsel %vm447, %v1563, %v1565
    %v1573 = vsel %vm447, %v1569, %v1563
    %v1574 = vmul.f32 %v1572, %v455
    %v1575 = vmul.f32 %v1571, %v459
    %v1576 = vmul.f32 %v1570, %v463
    %v1577 = vmul.f32 %v1573, %v467
    %1579 = vset.pattern.permute.xlu0 0
    %1580 = vperm.xlu0 %1579, %v1349
    %v1581 = vpop.permute.xlu0 %1580
    %v1583 = vmul.f32 %v1574, %v1581
    %v1584 = vmul.f32 %v1575, %v1581
    %v1585 = vmul.f32 %v1576, %v1581
    %v1586 = vmul.f32 %v1577, %v1581
    %v1587 = vadd.f32 %v1558, %v1583
    %v1588 = vadd.f32 %v1559, %v1584
    %v1589 = vadd.f32 %v1560, %v1585
    %v1590 = vadd.f32 %v1561, %v1586
    %v1591 = vadd.f32 %v1587, %v1588
    %v1592 = vadd.f32 %v1591, %v1589
    %v1593 = vadd.f32 %v1592, %v1590
    %1594 = vadd.xlane.f32.xlu0 %v1593
    %v1595 = vpop.xlane.xlu0 %1594
    %v1596 = vmul.f32 %v1587, %v1587
    %v1597 = vmul.f32 %v1588, %v1588
    %v1598 = vmul.f32 %v1589, %v1589
    %v1599 = vmul.f32 %v1590, %v1590
    %v1600 = vadd.f32 %v1596, %v1597
    %v1601 = vadd.f32 %v1600, %v1598
    %v1602 = vadd.f32 %v1601, %v1599
    %1603 = vadd.xlane.f32.xlu0 %v1602
    %v1604 = vpop.xlane.xlu0 %1603
    %v1605 = vmul.f32 %v1595, 0.001953125
    %v1606 = vmul.f32 %v1604, 0.001953125
    %v1607 = vmul.f32 %v1605, %v1605
    %v1608 = vsub.f32 %v1606, %v1607
    %v1609 = vsub.f32 %v1587, %v1605
    %v1610 = vsub.f32 %v1588, %v1605
    %v1611 = vsub.f32 %v1589, %v1605
    %v1612 = vsub.f32 %v1590, %v1605
    %v1613 = vadd.f32 %v1608, 1e-05
    %v1614 = vrsqrt.pop %v1613
    %v1615 = vmul.f32 %v1609, %v1614
    %v1616 = vmul.f32 %v1610, %v1614
    %v1617 = vmul.f32 %v1611, %v1614
    %v1618 = vmul.f32 %v1612, %v1614
    %v1619 = vld [vmem:[%s8] sm:$0xff]
    %v1620 = vld [vmem:[%s8 + $0x8] sm:$0xf]
    %v1621 = vld [vmem:[%s8 + $0x10] sm:$0xff]
    %v1622 = vld [vmem:[%s8 + $0x18] sm:$0xf]
    %v1623 = vld [vmem:[%s8 + $0x20] sm:$0xff]
    %v1624 = vld [vmem:[%s8 + $0x28] sm:$0xf]
    %v1625 = vld [vmem:[%s8 + $0x30] sm:$0xff]
    %v1626 = vld [vmem:[%s8 + $0x38] sm:$0xf]
    %v1627 = vld [vmem:[%s8 + $0x40] sm:$0xff]
    %v1628 = vld [vmem:[%s8 + $0x48] sm:$0xf]
    %v1629 = vld [vmem:[%s8 + $0x50] sm:$0xff]
    %v1630 = vld [vmem:[%s8 + $0x58] sm:$0xf]
    %v1631 = vld [vmem:[%s8 + $0x60] sm:$0xff]
    %v1632 = vld [vmem:[%s8 + $0x68] sm:$0xf]
    %v1633 = vld [vmem:[%s8 + $0x70] sm:$0xff]
    %v1634 = vld [vmem:[%s8 + $0x78] sm:$0xf]
    %v1635 = vlaneseq
    %v1636 = vshrl.u32 %v1635, 7
    %v1637 = vsub.s32 0, %v1636
    %v1638 = vrot.slane %v1615, %v1637
    %v1639 = vlaneseq
    %v1640 = vshrl.u32 %v1639, 7
    %v1641 = vsub.s32 0, %v1640
    %v1642 = vrot.slane %v1616, %v1641
    %v1643 = vlaneseq
    %v1644 = vshrl.u32 %v1643, 7
    %v1645 = vsub.s32 0, %v1644
    %v1646 = vrot.slane %v1617, %v1645
    %v1647 = vlaneseq
    %v1648 = vshrl.u32 %v1647, 7
    %v1649 = vsub.s32 0, %v1648
    %v1650 = vrot.slane %v1618, %v1649
    %1652 = vset.pattern.permute.xlu0 0
    %1653 = vperm.xlu0 %1652, %v1619
    %v1654 = vpop.permute.xlu0 %1653
    %1657 = vset.pattern.permute.xlu0 0
    %1658 = vperm.xlu0 %1657, %v1620
    %v1659 = vpop.permute.xlu0 %1658
    %v1661 = vmul.f32 %v1638, %v1654
    %v1662 = vmul.f32 %v1642, %v1654
    %v1663 = vmul.f32 %v1646, %v1654
    %v1664 = vmul.f32 %v1650, %v1654
    %v1665 = vmul.f32 %v1638, %v1659
    %v1666 = vmul.f32 %v1642, %v1659
    %v1667 = vmul.f32 %v1646, %v1659
    %v1668 = vmul.f32 %v1650, %v1659
    %v1669 = vlaneseq
    %v1670 = vshrl.u32 %v1669, 7
    %v1671 = vsub.s32 1, %v1670
    %v1672 = vrot.slane %v1615, %v1671
    %v1673 = vlaneseq
    %v1674 = vshrl.u32 %v1673, 7
    %v1675 = vsub.s32 1, %v1674
    %v1676 = vrot.slane %v1616, %v1675
    %v1677 = vlaneseq
    %v1678 = vshrl.u32 %v1677, 7
    %v1679 = vsub.s32 1, %v1678
    %v1680 = vrot.slane %v1617, %v1679
    %v1681 = vlaneseq
    %v1682 = vshrl.u32 %v1681, 7
    %v1683 = vsub.s32 1, %v1682
    %v1684 = vrot.slane %v1618, %v1683
    %1686 = vset.pattern.permute.xlu0 0
    %1687 = vperm.xlu0 %1686, %v1621
    %v1688 = vpop.permute.xlu0 %1687
    %1691 = vset.pattern.permute.xlu0 0
    %1692 = vperm.xlu0 %1691, %v1622
    %v1693 = vpop.permute.xlu0 %1692
    %v1695 = vmul.f32 %v1672, %v1688
    %v1696 = vmul.f32 %v1676, %v1688
    %v1697 = vmul.f32 %v1680, %v1688
    %v1698 = vmul.f32 %v1684, %v1688
    %v1699 = vmul.f32 %v1672, %v1693
    %v1700 = vmul.f32 %v1676, %v1693
    %v1701 = vmul.f32 %v1680, %v1693
    %v1702 = vmul.f32 %v1684, %v1693
    %v1703 = vadd.f32 %v1661, %v1695
    %v1704 = vadd.f32 %v1662, %v1696
    %v1705 = vadd.f32 %v1663, %v1697
    %v1706 = vadd.f32 %v1664, %v1698
    %v1707 = vadd.f32 %v1665, %v1699
    %v1708 = vadd.f32 %v1666, %v1700
    %v1709 = vadd.f32 %v1667, %v1701
    %v1710 = vadd.f32 %v1668, %v1702
    %v1711 = vlaneseq
    %v1712 = vshrl.u32 %v1711, 7
    %v1713 = vsub.s32 2, %v1712
    %v1714 = vrot.slane %v1615, %v1713
    %v1715 = vlaneseq
    %v1716 = vshrl.u32 %v1715, 7
    %v1717 = vsub.s32 2, %v1716
    %v1718 = vrot.slane %v1616, %v1717
    %v1719 = vlaneseq
    %v1720 = vshrl.u32 %v1719, 7
    %v1721 = vsub.s32 2, %v1720
    %v1722 = vrot.slane %v1617, %v1721
    %v1723 = vlaneseq
    %v1724 = vshrl.u32 %v1723, 7
    %v1725 = vsub.s32 2, %v1724
    %v1726 = vrot.slane %v1618, %v1725
    %1728 = vset.pattern.permute.xlu0 0
    %1729 = vperm.xlu0 %1728, %v1623
    %v1730 = vpop.permute.xlu0 %1729
    %1733 = vset.pattern.permute.xlu0 0
    %1734 = vperm.xlu0 %1733, %v1624
    %v1735 = vpop.permute.xlu0 %1734
    %v1737 = vmul.f32 %v1714, %v1730
    %v1738 = vmul.f32 %v1718, %v1730
    %v1739 = vmul.f32 %v1722, %v1730
    %v1740 = vmul.f32 %v1726, %v1730
    %v1741 = vmul.f32 %v1714, %v1735
    %v1742 = vmul.f32 %v1718, %v1735
    %v1743 = vmul.f32 %v1722, %v1735
    %v1744 = vmul.f32 %v1726, %v1735
    %v1745 = vadd.f32 %v1703, %v1737
    %v1746 = vadd.f32 %v1704, %v1738
    %v1747 = vadd.f32 %v1705, %v1739
    %v1748 = vadd.f32 %v1706, %v1740
    %v1749 = vadd.f32 %v1707, %v1741
    %v1750 = vadd.f32 %v1708, %v1742
    %v1751 = vadd.f32 %v1709, %v1743
    %v1752 = vadd.f32 %v1710, %v1744
    %v1753 = vlaneseq
    %v1754 = vshrl.u32 %v1753, 7
    %v1755 = vsub.s32 3, %v1754
    %v1756 = vrot.slane %v1615, %v1755
    %v1757 = vlaneseq
    %v1758 = vshrl.u32 %v1757, 7
    %v1759 = vsub.s32 3, %v1758
    %v1760 = vrot.slane %v1616, %v1759
    %v1761 = vlaneseq
    %v1762 = vshrl.u32 %v1761, 7
    %v1763 = vsub.s32 3, %v1762
    %v1764 = vrot.slane %v1617, %v1763
    %v1765 = vlaneseq
    %v1766 = vshrl.u32 %v1765, 7
    %v1767 = vsub.s32 3, %v1766
    %v1768 = vrot.slane %v1618, %v1767
    %1770 = vset.pattern.permute.xlu0 0
    %1771 = vperm.xlu0 %1770, %v1625
    %v1772 = vpop.permute.xlu0 %1771
    %1775 = vset.pattern.permute.xlu0 0
    %1776 = vperm.xlu0 %1775, %v1626
    %v1777 = vpop.permute.xlu0 %1776
    %v1779 = vmul.f32 %v1756, %v1772
    %v1780 = vmul.f32 %v1760, %v1772
    %v1781 = vmul.f32 %v1764, %v1772
    %v1782 = vmul.f32 %v1768, %v1772
    %v1783 = vmul.f32 %v1756, %v1777
    %v1784 = vmul.f32 %v1760, %v1777
    %v1785 = vmul.f32 %v1764, %v1777
    %v1786 = vmul.f32 %v1768, %v1777
    %v1787 = vadd.f32 %v1745, %v1779
    %v1788 = vadd.f32 %v1746, %v1780
    %v1789 = vadd.f32 %v1747, %v1781
    %v1790 = vadd.f32 %v1748, %v1782
    %v1791 = vadd.f32 %v1749, %v1783
    %v1792 = vadd.f32 %v1750, %v1784
    %v1793 = vadd.f32 %v1751, %v1785
    %v1794 = vadd.f32 %v1752, %v1786
    %v1795 = vlaneseq
    %v1796 = vshrl.u32 %v1795, 7
    %v1797 = vsub.s32 4, %v1796
    %v1798 = vrot.slane %v1615, %v1797
    %v1799 = vlaneseq
    %v1800 = vshrl.u32 %v1799, 7
    %v1801 = vsub.s32 4, %v1800
    %v1802 = vrot.slane %v1616, %v1801
    %v1803 = vlaneseq
    %v1804 = vshrl.u32 %v1803, 7
    %v1805 = vsub.s32 4, %v1804
    %v1806 = vrot.slane %v1617, %v1805
    %v1807 = vlaneseq
    %v1808 = vshrl.u32 %v1807, 7
    %v1809 = vsub.s32 4, %v1808
    %v1810 = vrot.slane %v1618, %v1809
    %1812 = vset.pattern.permute.xlu0 0
    %1813 = vperm.xlu0 %1812, %v1627
    %v1814 = vpop.permute.xlu0 %1813
    %1817 = vset.pattern.permute.xlu0 0
    %1818 = vperm.xlu0 %1817, %v1628
    %v1819 = vpop.permute.xlu0 %1818
    %v1821 = vmul.f32 %v1798, %v1814
    %v1822 = vmul.f32 %v1802, %v1814
    %v1823 = vmul.f32 %v1806, %v1814
    %v1824 = vmul.f32 %v1810, %v1814
    %v1825 = vmul.f32 %v1798, %v1819
    %v1826 = vmul.f32 %v1802, %v1819
    %v1827 = vmul.f32 %v1806, %v1819
    %v1828 = vmul.f32 %v1810, %v1819
    %v1829 = vadd.f32 %v1787, %v1821
    %v1830 = vadd.f32 %v1788, %v1822
    %v1831 = vadd.f32 %v1789, %v1823
    %v1832 = vadd.f32 %v1790, %v1824
    %v1833 = vadd.f32 %v1791, %v1825
    %v1834 = vadd.f32 %v1792, %v1826
    %v1835 = vadd.f32 %v1793, %v1827
    %v1836 = vadd.f32 %v1794, %v1828
    %v1837 = vlaneseq
    %v1838 = vshrl.u32 %v1837, 7
    %v1839 = vsub.s32 5, %v1838
    %v1840 = vrot.slane %v1615, %v1839
    %v1841 = vlaneseq
    %v1842 = vshrl.u32 %v1841, 7
    %v1843 = vsub.s32 5, %v1842
    %v1844 = vrot.slane %v1616, %v1843
    %v1845 = vlaneseq
    %v1846 = vshrl.u32 %v1845, 7
    %v1847 = vsub.s32 5, %v1846
    %v1848 = vrot.slane %v1617, %v1847
    %v1849 = vlaneseq
    %v1850 = vshrl.u32 %v1849, 7
    %v1851 = vsub.s32 5, %v1850
    %v1852 = vrot.slane %v1618, %v1851
    %1854 = vset.pattern.permute.xlu0 0
    %1855 = vperm.xlu0 %1854, %v1629
    %v1856 = vpop.permute.xlu0 %1855
    %1859 = vset.pattern.permute.xlu0 0
    %1860 = vperm.xlu0 %1859, %v1630
    %v1861 = vpop.permute.xlu0 %1860
    %v1863 = vmul.f32 %v1840, %v1856
    %v1864 = vmul.f32 %v1844, %v1856
    %v1865 = vmul.f32 %v1848, %v1856
    %v1866 = vmul.f32 %v1852, %v1856
    %v1867 = vmul.f32 %v1840, %v1861
    %v1868 = vmul.f32 %v1844, %v1861
    %v1869 = vmul.f32 %v1848, %v1861
    %v1870 = vmul.f32 %v1852, %v1861
    %v1871 = vadd.f32 %v1829, %v1863
    %v1872 = vadd.f32 %v1830, %v1864
    %v1873 = vadd.f32 %v1831, %v1865
    %v1874 = vadd.f32 %v1832, %v1866
    %v1875 = vadd.f32 %v1833, %v1867
    %v1876 = vadd.f32 %v1834, %v1868
    %v1877 = vadd.f32 %v1835, %v1869
    %v1878 = vadd.f32 %v1836, %v1870
    %v1879 = vlaneseq
    %v1880 = vshrl.u32 %v1879, 7
    %v1881 = vsub.s32 6, %v1880
    %v1882 = vrot.slane %v1615, %v1881
    %v1883 = vlaneseq
    %v1884 = vshrl.u32 %v1883, 7
    %v1885 = vsub.s32 6, %v1884
    %v1886 = vrot.slane %v1616, %v1885
    %v1887 = vlaneseq
    %v1888 = vshrl.u32 %v1887, 7
    %v1889 = vsub.s32 6, %v1888
    %v1890 = vrot.slane %v1617, %v1889
    %v1891 = vlaneseq
    %v1892 = vshrl.u32 %v1891, 7
    %v1893 = vsub.s32 6, %v1892
    %v1894 = vrot.slane %v1618, %v1893
    %1896 = vset.pattern.permute.xlu0 0
    %1897 = vperm.xlu0 %1896, %v1631
    %v1898 = vpop.permute.xlu0 %1897
    %1901 = vset.pattern.permute.xlu0 0
    %1902 = vperm.xlu0 %1901, %v1632
    %v1903 = vpop.permute.xlu0 %1902
    %v1905 = vmul.f32 %v1882, %v1898
    %v1906 = vmul.f32 %v1886, %v1898
    %v1907 = vmul.f32 %v1890, %v1898
    %v1908 = vmul.f32 %v1894, %v1898
    %v1909 = vmul.f32 %v1882, %v1903
    %v1910 = vmul.f32 %v1886, %v1903
    %v1911 = vmul.f32 %v1890, %v1903
    %v1912 = vmul.f32 %v1894, %v1903
    %v1913 = vadd.f32 %v1871, %v1905
    %v1914 = vadd.f32 %v1872, %v1906
    %v1915 = vadd.f32 %v1873, %v1907
    %v1916 = vadd.f32 %v1874, %v1908
    %v1917 = vadd.f32 %v1875, %v1909
    %v1918 = vadd.f32 %v1876, %v1910
    %v1919 = vadd.f32 %v1877, %v1911
    %v1920 = vadd.f32 %v1878, %v1912
    %v1921 = vlaneseq
    %v1922 = vshrl.u32 %v1921, 7
    %v1923 = vsub.s32 7, %v1922
    %v1924 = vrot.slane %v1615, %v1923
    %v1925 = vlaneseq
    %v1926 = vshrl.u32 %v1925, 7
    %v1927 = vsub.s32 7, %v1926
    %v1928 = vrot.slane %v1616, %v1927
    %v1929 = vlaneseq
    %v1930 = vshrl.u32 %v1929, 7
    %v1931 = vsub.s32 7, %v1930
    %v1932 = vrot.slane %v1617, %v1931
    %v1933 = vlaneseq
    %v1934 = vshrl.u32 %v1933, 7
    %v1935 = vsub.s32 7, %v1934
    %v1936 = vrot.slane %v1618, %v1935
    %1938 = vset.pattern.permute.xlu0 0
    %1939 = vperm.xlu0 %1938, %v1633
    %v1940 = vpop.permute.xlu0 %1939
    %1943 = vset.pattern.permute.xlu0 0
    %1944 = vperm.xlu0 %1943, %v1634
    %v1945 = vpop.permute.xlu0 %1944
    %v1947 = vmul.f32 %v1924, %v1940
    %v1948 = vmul.f32 %v1928, %v1940
    %v1949 = vmul.f32 %v1932, %v1940
    %v1950 = vmul.f32 %v1936, %v1940
    %v1951 = vmul.f32 %v1924, %v1945
    %v1952 = vmul.f32 %v1928, %v1945
    %v1953 = vmul.f32 %v1932, %v1945
    %v1954 = vmul.f32 %v1936, %v1945
    %v1955 = vadd.f32 %v1913, %v1947
    %v1956 = vadd.f32 %v1914, %v1948
    %v1957 = vadd.f32 %v1915, %v1949
    %v1958 = vadd.f32 %v1916, %v1950
    %v1959 = vadd.f32 %v1917, %v1951
    %v1960 = vadd.f32 %v1918, %v1952
    %v1961 = vadd.f32 %v1919, %v1953
    %v1962 = vadd.f32 %v1920, %v1954
    %v1963 = vadd.f32 %v1955, %v1956
    %v1964 = vadd.f32 %v1963, %v1957
    %v1965 = vadd.f32 %v1964, %v1958
    %1966 = vadd.xlane.f32.xlu0 %v1965
    %v1967 = vpop.xlane.xlu0 %1966
    %v1968 = vsel %vm497, %v1959, 0.0
    %v1969 = vsel %vm497, %v1960, 0.0
    %v1970 = vadd.f32 %v1968, %v1969
    %v1971 = vsel %vm497, %v1961, 0.0
    %v1972 = vadd.f32 %v1970, %v1971
    %v1973 = vsel %vm497, %v1962, 0.0
    %v1974 = vadd.f32 %v1972, %v1973
    %1975 = vadd.xlane.f32.xlu0 %v1974
    %v1976 = vpop.xlane.xlu0 %1975
    %v1977 = vmul.f32 %v1955, %v1955
    %v1978 = vmul.f32 %v1956, %v1956
    %v1979 = vmul.f32 %v1957, %v1957
    %v1980 = vmul.f32 %v1958, %v1958
    %v1981 = vmul.f32 %v1959, %v1959
    %v1982 = vmul.f32 %v1960, %v1960
    %v1983 = vmul.f32 %v1961, %v1961
    %v1984 = vmul.f32 %v1962, %v1962
    %v1985 = vadd.f32 %v1977, %v1978
    %v1986 = vadd.f32 %v1985, %v1979
    %v1987 = vadd.f32 %v1986, %v1980
    %1988 = vadd.xlane.f32.xlu0 %v1987
    %v1989 = vpop.xlane.xlu0 %1988
    %v1990 = vsel %vm497, %v1981, 0.0
    %v1991 = vsel %vm497, %v1982, 0.0
    %v1992 = vadd.f32 %v1990, %v1991
    %v1993 = vsel %vm497, %v1983, 0.0
    %v1994 = vadd.f32 %v1992, %v1993
    %v1995 = vsel %vm497, %v1984, 0.0
    %v1996 = vadd.f32 %v1994, %v1995
    %1997 = vadd.xlane.f32.xlu0 %v1996
    %v1998 = vpop.xlane.xlu0 %1997
    %v1999 = vmul.f32 %v1967, 0.001953125
    %v2000 = vmul.f32 %v1976, 0.001953125
    %v2001 = vmul.f32 %v1989, 0.001953125
    %v2002 = vmul.f32 %v1998, 0.001953125
    %v2003 = vmul.f32 %v1999, %v1999
    %v2004 = vmul.f32 %v2000, %v2000
    %v2005 = vsub.f32 %v2001, %v2003
    %v2006 = vsub.f32 %v2002, %v2004
    %v2007 = vsub.f32 %v1955, %v1999
    %v2008 = vsub.f32 %v1956, %v1999
    %v2009 = vsub.f32 %v1957, %v1999
    %v2010 = vsub.f32 %v1958, %v1999
    %v2011 = vsub.f32 %v1959, %v2000
    %v2012 = vsub.f32 %v1960, %v2000
    %v2013 = vsub.f32 %v1961, %v2000
    %v2014 = vsub.f32 %v1962, %v2000
    %v2015 = vadd.f32 %v2005, 1e-05
    %v2016 = vadd.f32 %v2006, 1e-05
    %v2017 = vrsqrt.pop %v2015
    %v2018 = vrsqrt.pop %v2016
    %v2019 = vmul.f32 %v2007, %v2017
    %v2020 = vmul.f32 %v2008, %v2017
    %v2021 = vmul.f32 %v2009, %v2017
    %v2022 = vmul.f32 %v2010, %v2017
    %v2023 = vmul.f32 %v2011, %v2018
    %v2024 = vmul.f32 %v2012, %v2018
    %v2025 = vmul.f32 %v2013, %v2018
    %v2026 = vmul.f32 %v2014, %v2018
    %v2027 = vmax.f32 %v2019, 0.0
    %v2028 = vmax.f32 %v2020, 0.0
    %v2029 = vmax.f32 %v2021, 0.0
    %v2030 = vmax.f32 %v2022, 0.0
    %v2031 = vmax.f32 %v2023, 0.0
    %v2032 = vmax.f32 %v2024, 0.0
    %v2033 = vmax.f32 %v2025, 0.0
    %v2034 = vmax.f32 %v2026, 0.0
    %2035 = vst [vmem:[#allocation2] sm:$0xff] %v2027
    %2036 = vst [vmem:[#allocation2 + $0x8] sm:$0xff] %v2028
    %2037 = vst [vmem:[#allocation2 + $0x10] sm:$0xff] %v2029
    %2038 = vst [vmem:[#allocation2 + $0x18] sm:$0xff] %v2030
    %2039 = vst [vmem:[#allocation2 + $0x20] sm:$0xf] %v2031
    %2040 = vst [vmem:[#allocation2 + $0x28] sm:$0xf] %v2032
    %2041 = vst [vmem:[#allocation2 + $0x30] sm:$0xf] %v2033
    %2042 = vst [vmem:[#allocation2 + $0x38] sm:$0xf] %v2034
    // Predicated region
    $region38: #{tpu_custom_call.1} parent=1 // pred_check
      _
    $region39: #{tpu_custom_call.1} parent=1 // pred_check_branch
      %2044 = sbr.rel (0) target = $region41
    $region40: #{tpu_custom_call.1} parent=1 // pred_region
      %s2046 = ssub.s32 1024, 1024
      %2047 = vsyncadd [#allocation3], %s2046
      %s2048 = sshll.u32 [#allocation2], 4
      %s2049 = int_to_ptr.vmem [resolvable:$true] %s2048
      %2054 = dma.vmem_to_hbm [thread:$0]  %s2049, 1024, %s9, [#allocation3], 512, 512, 32
    $region41: #{tpu_custom_call.1} parent=1 // pred_fallthru
      _
    // Predicated region
    $region42: #{tpu_custom_call.1} parent=1 // pred_check
      _
    $region43: #{tpu_custom_call.1} parent=1 // pred_check_branch
      %2056 = sbr.rel (0) target = $region45
    $region44: #{tpu_custom_call.1} parent=1 // pred_region
      %2057 = dma.done [#allocation3], 1024
    $region45: #{tpu_custom_call.1} parent=1 // pred_fallthru
      _
    %2058 = vsyncpa [#allocation3], 1

</llo_original>
